<compile_context>
chip_gen: v7x
topology: tpu7x:2x2x1
jax: 0.10.0
libtpu: 0.0.40
codegen_flags: <defaults>
</compile_context>

<pallas_src>
import jax
import jax.numpy as jnp
from jax.experimental import pallas as pl
from jax.experimental.pallas import tpu as pltpu


def lstm_head_kernel(x_ref, wih_ref, whh_ref, b_ref, w1_ref, b1_ref, w2_ref, b2_ref,
                     out_ref):
    # x_ref:   (T*B, D) bf16, rows ordered time-major (row index = t*B + b)
    # wih_ref: (D, 4*Hp) bf16   gate column blocks (i, f, o, g), each Hp wide
    # whh_ref: (Hp, 4*Hp) bf16  (rows H..Hp and cols H..Hp of each gate are zero)
    # b_ref:   (1, 4*Hp) f32    (padded lanes zero)
    # w1_ref:  (Hp, hidden) bf16 (rows H..Hp zero), b1_ref: (1, hidden) f32
    # w2_ref:  (1, hidden) f32 (row vector), b2_ref: (1, 1) f32
    B = out_ref.shape[0]
    TB, _ = x_ref.shape
    T = TB // B
    Hp = whh_ref.shape[0]

    # ---- hoisted input projection: one bf16 MXU matmul + bias for all timesteps ----
    gx = (jnp.dot(x_ref[...], wih_ref[...], preferred_element_type=jnp.float32)
          + b_ref[...])                                        # (T*B, 4*Hp) f32

    whh = whh_ref[...]                                         # (Hp, 4*Hp) bf16, read once

    h = jnp.zeros((B, Hp), jnp.float32)
    c = jnp.zeros((B, Hp), jnp.float32)

    # ---- recurrence: static unroll (T is tiny & trace-time constant).
    # TODO(synk): for larger T use lax.fori_loop(..., unroll=k) over a VMEM scratch
    # to bound vreg live ranges.
    for t in range(T):
        g_x = gx[t * B:(t + 1) * B, :]                         # contiguous (B, 4*Hp)
        gates = g_x + jnp.dot(h.astype(jnp.bfloat16), whh,
                              preferred_element_type=jnp.float32)
        # gate blocks (i, f, o, g), each Hp=128-lane aligned:
        #   one fused sigmoid over [0, 3*Hp), one tanh over [3*Hp, 4*Hp)
        ifo = jax.nn.sigmoid(gates[:, : 3 * Hp])
        g_g = jnp.tanh(gates[:, 3 * Hp:])
        i_g = ifo[:, 0 * Hp:1 * Hp]
        f_g = ifo[:, 1 * Hp:2 * Hp]
        o_g = ifo[:, 2 * Hp:3 * Hp]
        # padded lanes: bias=0, W_hh/W_ih cols=0 -> i=f=o=0.5, g=0 -> c,h stay 0 there
        c = f_g * c + i_g * g_g
        h = o_g * jnp.tanh(c)

    # ---- head: Linear -> ReLU -> Dropout(identity in eval) -> Linear ----
    z = (jnp.dot(h.astype(jnp.bfloat16), w1_ref[...],
                 preferred_element_type=jnp.float32) + b1_ref[...])
    z = jnp.maximum(z, 0.0)
    # 1-output-column matmul replaced by VPU multiply + lane reduction (off the MXU path)
    out_ref[...] = (jnp.sum(z * w2_ref[...], axis=-1, keepdims=True)
                    + b2_ref[...]).astype(out_ref.dtype)


def meta_classifier_forward(x_btd, kp):
    """x_btd: (B, T, D) float32 (batch_first, like PyTorch). Returns (B, 1) float32."""
    B, T, D = x_btd.shape
    Hp = kp["whh_t"].shape[0]
    hidden = kp["w1_t"].shape[1]

    # Time-major + bf16 once in the wrapper (one tiny, fully hidden HBM pass) so the
    # kernel's per-timestep slice is a contiguous row block instead of a stride-T gather.
    x_tb_d = jnp.transpose(x_btd, (1, 0, 2)).reshape(T * B, D).astype(jnp.bfloat16)

    flops = (2 * T * B * D * 4 * Hp          # hoisted input projection
             + T * 2 * B * Hp * 4 * Hp       # recurrent h @ W_hh
             + 2 * B * Hp * hidden           # fc1
             + 2 * B * hidden)               # fc2 (VPU reduce)
    transcendentals = T * B * 5 * Hp         # 3 sigmoid + 2 tanh per hidden unit per step
    bytes_accessed = (x_tb_d.size * 2
                      + kp["wih_t"].size * 2 + kp["whh_t"].size * 2
                      + kp["b_all"].size * 4
                      + kp["w1_t"].size * 2 + kp["b1"].size * 4
                      + kp["w2_row"].size * 4 + kp["b2"].size * 4
                      + B * 1 * 4)

    vmem = pl.BlockSpec(memory_space=pltpu.MemorySpace.VMEM)  # whole-array VMEM resident
    return pl.pallas_call(
        lstm_head_kernel,
        out_shape=jax.ShapeDtypeStruct((B, 1), jnp.float32),
        in_specs=[vmem] * 8,
        out_specs=vmem,
        cost_estimate=pl.CostEstimate(flops=int(flops),
                                      transcendentals=int(transcendentals),
                                      bytes_accessed=int(bytes_accessed)),
    )(x_tb_d, kp["wih_t"], kp["whh_t"], kp["b_all"],
      kp["w1_t"], kp["b1"], kp["w2_row"], kp["b2"])


# ----------------------------- parameter handling -----------------------------

def make_torch_params(key, input_dim, lstm_hidden_dim, hidden_dim):
    """Deterministic synthetic parameters in PyTorch layout (gate rows i, f, g, o)."""
    ks = jax.random.split(key, 8)
    H = lstm_hidden_dim
    s = 1.0 / jnp.sqrt(H)
    u = lambda k, shape: jax.random.uniform(k, shape, jnp.float32, -s, s)
    return {
        "w_ih": u(ks[0], (4 * H, input_dim)),   # lstm.weight_ih_l0
        "w_hh": u(ks[1], (4 * H, H)),           # lstm.weight_hh_l0
        "b_ih": u(ks[2], (4 * H,)),
        "b_hh": u(ks[3], (4 * H,)),
        "w1":   u(ks[4], (hidden_dim, H)),      # fc[0].weight
        "b1":   u(ks[5], (hidden_dim,)),
        "w2":   u(ks[6], (1, hidden_dim)),      # fc[3].weight
        "b2":   u(ks[7], (1,)),
    }


def _ifgo_rows_to_padded_ifog_cols(w, H, Hp):
    """(4H, X) with PyTorch gate-row order (i,f,g,o) ->
    (X, 4*Hp) with gate-column blocks (i,f,o,g), each block zero-padded H -> Hp lanes."""
    i, f, g, o = w[0:H], w[H:2 * H], w[2 * H:3 * H], w[3 * H:4 * H]
    blocks = [jnp.pad(blk.T, ((0, 0), (0, Hp - H))) for blk in (i, f, o, g)]
    return jnp.concatenate(blocks, axis=1)


def _ifgo_vec_to_padded_ifog(b, H, Hp):
    i, f, g, o = b[0:H], b[H:2 * H], b[2 * H:3 * H], b[3 * H:4 * H]
    return jnp.concatenate([jnp.pad(v, (0, Hp - H)) for v in (i, f, o, g)])


def prep_kernel_params(tp):
    """Transpose, fuse biases, permute gate columns to (i,f,o,g), zero-pad each gate
    (and the hidden state) to a 128-lane multiple, and cast matmul weights to bf16.
    NOTE: this layout and the kernel's gate slicing must change together."""
    H = tp["w_hh"].shape[1]
    Hp = ((H + 127) // 128) * 128
    b = tp["b_ih"] + tp["b_hh"]

    wih_t = _ifgo_rows_to_padded_ifog_cols(tp["w_ih"], H, Hp)          # (D, 4Hp)
    whh_t = _ifgo_rows_to_padded_ifog_cols(tp["w_hh"], H, Hp)          # (H, 4Hp)
    whh_t = jnp.pad(whh_t, ((0, Hp - H), (0, 0)))                      # (Hp, 4Hp)
    w1_t = jnp.pad(tp["w1"].T, ((0, Hp - H), (0, 0)))                  # (Hp, hidden)

    return {
        "wih_t": wih_t.astype(jnp.bfloat16),
        "whh_t": whh_t.astype(jnp.bfloat16),
        "b_all": _ifgo_vec_to_padded_ifog(b, H, Hp)[None, :],          # (1, 4Hp) f32
        "w1_t": w1_t.astype(jnp.bfloat16),
        "b1": tp["b1"][None, :],                                       # (1, hidden) f32
        "w2_row": tp["w2"],                                            # (1, hidden) f32
        "b2": tp["b2"][None, :],                                       # (1, 1) f32
    }


# ------------------------------ plain-JAX reference ------------------------------

def reference_forward(x_btd, tp):
    """Reference in PyTorch layout / gate order (i,f,g,o), eval-mode dropout, f32."""
    B, T, D = x_btd.shape
    H = tp["w_hh"].shape[1]
    wih_t, whh_t = tp["w_ih"].T, tp["w_hh"].T
    b = tp["b_ih"] + tp["b_hh"]
    h = jnp.zeros((B, H), jnp.float32)
    c = jnp.zeros((B, H), jnp.float32)
    for t in range(T):
        gates = x_btd[:, t, :] @ wih_t + h @ whh_t + b
        i = jax.nn.sigmoid(gates[:, 0 * H:1 * H])
        f = jax.nn.sigmoid(gates[:, 1 * H:2 * H])
        g = jnp.tanh(gates[:, 2 * H:3 * H])
        o = jax.nn.sigmoid(gates[:, 3 * H:4 * H])
        c = f * c + i * g
        h = o * jnp.tanh(c)
    z = jnp.maximum(h @ tp["w1"].T + tp["b1"], 0.0)
    return z @ tp["w2"].T + tp["b2"]


if __name__ == "__main__":
    B, T, D = 2, 8, 16
    LSTM_H, HIDDEN = 64, 128

    key = jax.random.PRNGKey(0)
    k_x, k_p = jax.random.split(key)
    x = jax.random.normal(k_x, (B, T, D), jnp.float32)

    torch_params = make_torch_params(k_p, D, LSTM_H, HIDDEN)
    kernel_params = prep_kernel_params(torch_params)

    out = meta_classifier_forward(x, kernel_params)
    out = jax.block_until_ready(out)
    assert out.shape == (B, 1)

    ref = reference_forward(x, torch_params)
    # bf16 matmul operands (f32 accumulation / state) -> looser tolerance vs f32 reference
    assert jnp.allclose(out, ref, atol=2e-2, rtol=2e-2), (out, ref)

    print("KERNEL_OK")
</pallas_src>

<mosaic_0001>
module attributes {stable_mosaic.version = 11 : i64} {
  func.func @lstm_head_kernel(%arg0: memref<16x16xbf16, #tpu.memory_space<vmem>>, %arg1: memref<16x512xbf16, #tpu.memory_space<vmem>>, %arg2: memref<128x512xbf16, #tpu.memory_space<vmem>>, %arg3: memref<1x512xf32, #tpu.memory_space<vmem>>, %arg4: memref<128x128xbf16, #tpu.memory_space<vmem>>, %arg5: memref<1x128xf32, #tpu.memory_space<vmem>>, %arg6: memref<1x128xf32, #tpu.memory_space<vmem>>, %arg7: memref<1x1xf32, #tpu.memory_space<vmem>>, %arg8: memref<2x1xf32, #tpu.memory_space<vmem>>) attributes {dimension_semantics = [], scalar_prefetch = 0 : i64, scratch_operands = 0 : i64, tpu.core_type = #tpu.core_type<tc>} {
    %c0 = arith.constant 0 : index
    %c0_0 = arith.constant 0 : index
    %0 = vector.load %arg0[%c0, %c0_0] : memref<16x16xbf16, #tpu.memory_space<vmem>>, vector<16x16xbf16>
    %c0_1 = arith.constant 0 : index
    %c0_2 = arith.constant 0 : index
    %1 = vector.load %arg1[%c0_1, %c0_2] : memref<16x512xbf16, #tpu.memory_space<vmem>>, vector<16x512xbf16>
    %cst = arith.constant dense<0.000000e+00> : vector<16x512xf32>
    %2 = tpu.matmul %0, %1, %cst {dimension_numbers = #tpu.dot_dimension_numbers<[1], [0], [0], [1], [0, 0, 1, 1], [], []>} : vector<16x16xbf16>, vector<16x512xbf16>, vector<16x512xf32> -> vector<16x512xf32>
    %c0_3 = arith.constant 0 : index
    %c0_4 = arith.constant 0 : index
    %3 = vector.load %arg3[%c0_3, %c0_4] : memref<1x512xf32, #tpu.memory_space<vmem>>, vector<1x512xf32>
    %4 = vector.broadcast %3 : vector<1x512xf32> to vector<16x512xf32>
    %5 = arith.addf %2, %4 : vector<16x512xf32>
    %c0_5 = arith.constant 0 : index
    %c0_6 = arith.constant 0 : index
    %6 = vector.load %arg2[%c0_5, %c0_6] : memref<128x512xbf16, #tpu.memory_space<vmem>>, vector<128x512xbf16>
    %cst_7 = arith.constant 0.000000e+00 : f32
    %7 = vector.broadcast %cst_7 : f32 to vector<2x128xf32>
    %cst_8 = arith.constant 0.000000e+00 : f32
    %8 = vector.broadcast %cst_8 : f32 to vector<2x128xf32>
    %9 = vector.extract_strided_slice %5 {offsets = [0, 0], sizes = [2, 512], strides = [1, 1]} : vector<16x512xf32> to vector<2x512xf32>
    %10 = arith.truncf %7 : vector<2x128xf32> to vector<2x128xbf16>
    %cst_9 = arith.constant dense<0.000000e+00> : vector<2x512xf32>
    %11 = tpu.matmul %10, %6, %cst_9 {dimension_numbers = #tpu.dot_dimension_numbers<[1], [0], [0], [1], [0, 0, 1, 1], [], []>} : vector<2x128xbf16>, vector<128x512xbf16>, vector<2x512xf32> -> vector<2x512xf32>
    %12 = arith.addf %9, %11 : vector<2x512xf32>
    %13 = vector.extract_strided_slice %12 {offsets = [0, 0], sizes = [2, 384], strides = [1, 1]} : vector<2x512xf32> to vector<2x384xf32>
    %14 = arith.negf %13 : vector<2x384xf32>
    %15 = math.exp %14 : vector<2x384xf32>
    %cst_10 = arith.constant 1.000000e+00 : f32
    %16 = vector.broadcast %cst_10 : f32 to vector<2x384xf32>
    %17 = arith.addf %16, %15 : vector<2x384xf32>
    %18 = arith.divf %16, %17 : vector<2x384xf32>
    %19 = vector.extract_strided_slice %12 {offsets = [0, 384], sizes = [2, 128], strides = [1, 1]} : vector<2x512xf32> to vector<2x128xf32>
    %20 = math.tanh %19 : vector<2x128xf32>
    %21 = vector.extract_strided_slice %18 {offsets = [0, 0], sizes = [2, 128], strides = [1, 1]} : vector<2x384xf32> to vector<2x128xf32>
    %22 = vector.extract_strided_slice %18 {offsets = [0, 128], sizes = [2, 128], strides = [1, 1]} : vector<2x384xf32> to vector<2x128xf32>
    %23 = vector.extract_strided_slice %18 {offsets = [0, 256], sizes = [2, 128], strides = [1, 1]} : vector<2x384xf32> to vector<2x128xf32>
    %24 = arith.mulf %22, %8 : vector<2x128xf32>
    %25 = arith.mulf %21, %20 : vector<2x128xf32>
    %26 = arith.addf %24, %25 : vector<2x128xf32>
    %27 = math.tanh %26 : vector<2x128xf32>
    %28 = arith.mulf %23, %27 : vector<2x128xf32>
    %29 = vector.extract_strided_slice %5 {offsets = [2, 0], sizes = [2, 512], strides = [1, 1]} : vector<16x512xf32> to vector<2x512xf32>
    %30 = arith.truncf %28 : vector<2x128xf32> to vector<2x128xbf16>
    %cst_11 = arith.constant dense<0.000000e+00> : vector<2x512xf32>
    %31 = tpu.matmul %30, %6, %cst_11 {dimension_numbers = #tpu.dot_dimension_numbers<[1], [0], [0], [1], [0, 0, 1, 1], [], []>} : vector<2x128xbf16>, vector<128x512xbf16>, vector<2x512xf32> -> vector<2x512xf32>
    %32 = arith.addf %29, %31 : vector<2x512xf32>
    %33 = vector.extract_strided_slice %32 {offsets = [0, 0], sizes = [2, 384], strides = [1, 1]} : vector<2x512xf32> to vector<2x384xf32>
    %34 = arith.negf %33 : vector<2x384xf32>
    %35 = math.exp %34 : vector<2x384xf32>
    %cst_12 = arith.constant 1.000000e+00 : f32
    %36 = vector.broadcast %cst_12 : f32 to vector<2x384xf32>
    %37 = arith.addf %36, %35 : vector<2x384xf32>
    %38 = arith.divf %36, %37 : vector<2x384xf32>
    %39 = vector.extract_strided_slice %32 {offsets = [0, 384], sizes = [2, 128], strides = [1, 1]} : vector<2x512xf32> to vector<2x128xf32>
    %40 = math.tanh %39 : vector<2x128xf32>
    %41 = vector.extract_strided_slice %38 {offsets = [0, 0], sizes = [2, 128], strides = [1, 1]} : vector<2x384xf32> to vector<2x128xf32>
    %42 = vector.extract_strided_slice %38 {offsets = [0, 128], sizes = [2, 128], strides = [1, 1]} : vector<2x384xf32> to vector<2x128xf32>
    %43 = vector.extract_strided_slice %38 {offsets = [0, 256], sizes = [2, 128], strides = [1, 1]} : vector<2x384xf32> to vector<2x128xf32>
    %44 = arith.mulf %42, %26 : vector<2x128xf32>
    %45 = arith.mulf %41, %40 : vector<2x128xf32>
    %46 = arith.addf %44, %45 : vector<2x128xf32>
    %47 = math.tanh %46 : vector<2x128xf32>
    %48 = arith.mulf %43, %47 : vector<2x128xf32>
    %49 = vector.extract_strided_slice %5 {offsets = [4, 0], sizes = [2, 512], strides = [1, 1]} : vector<16x512xf32> to vector<2x512xf32>
    %50 = arith.truncf %48 : vector<2x128xf32> to vector<2x128xbf16>
    %cst_13 = arith.constant dense<0.000000e+00> : vector<2x512xf32>
    %51 = tpu.matmul %50, %6, %cst_13 {dimension_numbers = #tpu.dot_dimension_numbers<[1], [0], [0], [1], [0, 0, 1, 1], [], []>} : vector<2x128xbf16>, vector<128x512xbf16>, vector<2x512xf32> -> vector<2x512xf32>
    %52 = arith.addf %49, %51 : vector<2x512xf32>
    %53 = vector.extract_strided_slice %52 {offsets = [0, 0], sizes = [2, 384], strides = [1, 1]} : vector<2x512xf32> to vector<2x384xf32>
    %54 = arith.negf %53 : vector<2x384xf32>
    %55 = math.exp %54 : vector<2x384xf32>
    %cst_14 = arith.constant 1.000000e+00 : f32
    %56 = vector.broadcast %cst_14 : f32 to vector<2x384xf32>
    %57 = arith.addf %56, %55 : vector<2x384xf32>
    %58 = arith.divf %56, %57 : vector<2x384xf32>
    %59 = vector.extract_strided_slice %52 {offsets = [0, 384], sizes = [2, 128], strides = [1, 1]} : vector<2x512xf32> to vector<2x128xf32>
    %60 = math.tanh %59 : vector<2x128xf32>
    %61 = vector.extract_strided_slice %58 {offsets = [0, 0], sizes = [2, 128], strides = [1, 1]} : vector<2x384xf32> to vector<2x128xf32>
    %62 = vector.extract_strided_slice %58 {offsets = [0, 128], sizes = [2, 128], strides = [1, 1]} : vector<2x384xf32> to vector<2x128xf32>
    %63 = vector.extract_strided_slice %58 {offsets = [0, 256], sizes = [2, 128], strides = [1, 1]} : vector<2x384xf32> to vector<2x128xf32>
    %64 = arith.mulf %62, %46 : vector<2x128xf32>
    %65 = arith.mulf %61, %60 : vector<2x128xf32>
    %66 = arith.addf %64, %65 : vector<2x128xf32>
    %67 = math.tanh %66 : vector<2x128xf32>
    %68 = arith.mulf %63, %67 : vector<2x128xf32>
    %69 = vector.extract_strided_slice %5 {offsets = [6, 0], sizes = [2, 512], strides = [1, 1]} : vector<16x512xf32> to vector<2x512xf32>
    %70 = arith.truncf %68 : vector<2x128xf32> to vector<2x128xbf16>
    %cst_15 = arith.constant dense<0.000000e+00> : vector<2x512xf32>
    %71 = tpu.matmul %70, %6, %cst_15 {dimension_numbers = #tpu.dot_dimension_numbers<[1], [0], [0], [1], [0, 0, 1, 1], [], []>} : vector<2x128xbf16>, vector<128x512xbf16>, vector<2x512xf32> -> vector<2x512xf32>
    %72 = arith.addf %69, %71 : vector<2x512xf32>
    %73 = vector.extract_strided_slice %72 {offsets = [0, 0], sizes = [2, 384], strides = [1, 1]} : vector<2x512xf32> to vector<2x384xf32>
    %74 = arith.negf %73 : vector<2x384xf32>
    %75 = math.exp %74 : vector<2x384xf32>
    %cst_16 = arith.constant 1.000000e+00 : f32
    %76 = vector.broadcast %cst_16 : f32 to vector<2x384xf32>
    %77 = arith.addf %76, %75 : vector<2x384xf32>
    %78 = arith.divf %76, %77 : vector<2x384xf32>
    %79 = vector.extract_strided_slice %72 {offsets = [0, 384], sizes = [2, 128], strides = [1, 1]} : vector<2x512xf32> to vector<2x128xf32>
    %80 = math.tanh %79 : vector<2x128xf32>
    %81 = vector.extract_strided_slice %78 {offsets = [0, 0], sizes = [2, 128], strides = [1, 1]} : vector<2x384xf32> to vector<2x128xf32>
    %82 = vector.extract_strided_slice %78 {offsets = [0, 128], sizes = [2, 128], strides = [1, 1]} : vector<2x384xf32> to vector<2x128xf32>
    %83 = vector.extract_strided_slice %78 {offsets = [0, 256], sizes = [2, 128], strides = [1, 1]} : vector<2x384xf32> to vector<2x128xf32>
    %84 = arith.mulf %82, %66 : vector<2x128xf32>
    %85 = arith.mulf %81, %80 : vector<2x128xf32>
    %86 = arith.addf %84, %85 : vector<2x128xf32>
    %87 = math.tanh %86 : vector<2x128xf32>
    %88 = arith.mulf %83, %87 : vector<2x128xf32>
    %89 = vector.extract_strided_slice %5 {offsets = [8, 0], sizes = [2, 512], strides = [1, 1]} : vector<16x512xf32> to vector<2x512xf32>
    %90 = arith.truncf %88 : vector<2x128xf32> to vector<2x128xbf16>
    %cst_17 = arith.constant dense<0.000000e+00> : vector<2x512xf32>
    %91 = tpu.matmul %90, %6, %cst_17 {dimension_numbers = #tpu.dot_dimension_numbers<[1], [0], [0], [1], [0, 0, 1, 1], [], []>} : vector<2x128xbf16>, vector<128x512xbf16>, vector<2x512xf32> -> vector<2x512xf32>
    %92 = arith.addf %89, %91 : vector<2x512xf32>
    %93 = vector.extract_strided_slice %92 {offsets = [0, 0], sizes = [2, 384], strides = [1, 1]} : vector<2x512xf32> to vector<2x384xf32>
    %94 = arith.negf %93 : vector<2x384xf32>
    %95 = math.exp %94 : vector<2x384xf32>
    %cst_18 = arith.constant 1.000000e+00 : f32
    %96 = vector.broadcast %cst_18 : f32 to vector<2x384xf32>
    %97 = arith.addf %96, %95 : vector<2x384xf32>
    %98 = arith.divf %96, %97 : vector<2x384xf32>
    %99 = vector.extract_strided_slice %92 {offsets = [0, 384], sizes = [2, 128], strides = [1, 1]} : vector<2x512xf32> to vector<2x128xf32>
    %100 = math.tanh %99 : vector<2x128xf32>
    %101 = vector.extract_strided_slice %98 {offsets = [0, 0], sizes = [2, 128], strides = [1, 1]} : vector<2x384xf32> to vector<2x128xf32>
    %102 = vector.extract_strided_slice %98 {offsets = [0, 128], sizes = [2, 128], strides = [1, 1]} : vector<2x384xf32> to vector<2x128xf32>
    %103 = vector.extract_strided_slice %98 {offsets = [0, 256], sizes = [2, 128], strides = [1, 1]} : vector<2x384xf32> to vector<2x128xf32>
    %104 = arith.mulf %102, %86 : vector<2x128xf32>
    %105 = arith.mulf %101, %100 : vector<2x128xf32>
    %106 = arith.addf %104, %105 : vector<2x128xf32>
    %107 = math.tanh %106 : vector<2x128xf32>
    %108 = arith.mulf %103, %107 : vector<2x128xf32>
    %109 = vector.extract_strided_slice %5 {offsets = [10, 0], sizes = [2, 512], strides = [1, 1]} : vector<16x512xf32> to vector<2x512xf32>
    %110 = arith.truncf %108 : vector<2x128xf32> to vector<2x128xbf16>
    %cst_19 = arith.constant dense<0.000000e+00> : vector<2x512xf32>
    %111 = tpu.matmul %110, %6, %cst_19 {dimension_numbers = #tpu.dot_dimension_numbers<[1], [0], [0], [1], [0, 0, 1, 1], [], []>} : vector<2x128xbf16>, vector<128x512xbf16>, vector<2x512xf32> -> vector<2x512xf32>
    %112 = arith.addf %109, %111 : vector<2x512xf32>
    %113 = vector.extract_strided_slice %112 {offsets = [0, 0], sizes = [2, 384], strides = [1, 1]} : vector<2x512xf32> to vector<2x384xf32>
    %114 = arith.negf %113 : vector<2x384xf32>
    %115 = math.exp %114 : vector<2x384xf32>
    %cst_20 = arith.constant 1.000000e+00 : f32
    %116 = vector.broadcast %cst_20 : f32 to vector<2x384xf32>
    %117 = arith.addf %116, %115 : vector<2x384xf32>
    %118 = arith.divf %116, %117 : vector<2x384xf32>
    %119 = vector.extract_strided_slice %112 {offsets = [0, 384], sizes = [2, 128], strides = [1, 1]} : vector<2x512xf32> to vector<2x128xf32>
    %120 = math.tanh %119 : vector<2x128xf32>
    %121 = vector.extract_strided_slice %118 {offsets = [0, 0], sizes = [2, 128], strides = [1, 1]} : vector<2x384xf32> to vector<2x128xf32>
    %122 = vector.extract_strided_slice %118 {offsets = [0, 128], sizes = [2, 128], strides = [1, 1]} : vector<2x384xf32> to vector<2x128xf32>
    %123 = vector.extract_strided_slice %118 {offsets = [0, 256], sizes = [2, 128], strides = [1, 1]} : vector<2x384xf32> to vector<2x128xf32>
    %124 = arith.mulf %122, %106 : vector<2x128xf32>
    %125 = arith.mulf %121, %120 : vector<2x128xf32>
    %126 = arith.addf %124, %125 : vector<2x128xf32>
    %127 = math.tanh %126 : vector<2x128xf32>
    %128 = arith.mulf %123, %127 : vector<2x128xf32>
    %129 = vector.extract_strided_slice %5 {offsets = [12, 0], sizes = [2, 512], strides = [1, 1]} : vector<16x512xf32> to vector<2x512xf32>
    %130 = arith.truncf %128 : vector<2x128xf32> to vector<2x128xbf16>
    %cst_21 = arith.constant dense<0.000000e+00> : vector<2x512xf32>
    %131 = tpu.matmul %130, %6, %cst_21 {dimension_numbers = #tpu.dot_dimension_numbers<[1], [0], [0], [1], [0, 0, 1, 1], [], []>} : vector<2x128xbf16>, vector<128x512xbf16>, vector<2x512xf32> -> vector<2x512xf32>
    %132 = arith.addf %129, %131 : vector<2x512xf32>
    %133 = vector.extract_strided_slice %132 {offsets = [0, 0], sizes = [2, 384], strides = [1, 1]} : vector<2x512xf32> to vector<2x384xf32>
    %134 = arith.negf %133 : vector<2x384xf32>
    %135 = math.exp %134 : vector<2x384xf32>
    %cst_22 = arith.constant 1.000000e+00 : f32
    %136 = vector.broadcast %cst_22 : f32 to vector<2x384xf32>
    %137 = arith.addf %136, %135 : vector<2x384xf32>
    %138 = arith.divf %136, %137 : vector<2x384xf32>
    %139 = vector.extract_strided_slice %132 {offsets = [0, 384], sizes = [2, 128], strides = [1, 1]} : vector<2x512xf32> to vector<2x128xf32>
    %140 = math.tanh %139 : vector<2x128xf32>
    %141 = vector.extract_strided_slice %138 {offsets = [0, 0], sizes = [2, 128], strides = [1, 1]} : vector<2x384xf32> to vector<2x128xf32>
    %142 = vector.extract_strided_slice %138 {offsets = [0, 128], sizes = [2, 128], strides = [1, 1]} : vector<2x384xf32> to vector<2x128xf32>
    %143 = vector.extract_strided_slice %138 {offsets = [0, 256], sizes = [2, 128], strides = [1, 1]} : vector<2x384xf32> to vector<2x128xf32>
    %144 = arith.mulf %142, %126 : vector<2x128xf32>
    %145 = arith.mulf %141, %140 : vector<2x128xf32>
    %146 = arith.addf %144, %145 : vector<2x128xf32>
    %147 = math.tanh %146 : vector<2x128xf32>
    %148 = arith.mulf %143, %147 : vector<2x128xf32>
    %149 = vector.extract_strided_slice %5 {offsets = [14, 0], sizes = [2, 512], strides = [1, 1]} : vector<16x512xf32> to vector<2x512xf32>
    %150 = arith.truncf %148 : vector<2x128xf32> to vector<2x128xbf16>
    %cst_23 = arith.constant dense<0.000000e+00> : vector<2x512xf32>
    %151 = tpu.matmul %150, %6, %cst_23 {dimension_numbers = #tpu.dot_dimension_numbers<[1], [0], [0], [1], [0, 0, 1, 1], [], []>} : vector<2x128xbf16>, vector<128x512xbf16>, vector<2x512xf32> -> vector<2x512xf32>
    %152 = arith.addf %149, %151 : vector<2x512xf32>
    %153 = vector.extract_strided_slice %152 {offsets = [0, 0], sizes = [2, 384], strides = [1, 1]} : vector<2x512xf32> to vector<2x384xf32>
    %154 = arith.negf %153 : vector<2x384xf32>
    %155 = math.exp %154 : vector<2x384xf32>
    %cst_24 = arith.constant 1.000000e+00 : f32
    %156 = vector.broadcast %cst_24 : f32 to vector<2x384xf32>
    %157 = arith.addf %156, %155 : vector<2x384xf32>
    %158 = arith.divf %156, %157 : vector<2x384xf32>
    %159 = vector.extract_strided_slice %152 {offsets = [0, 384], sizes = [2, 128], strides = [1, 1]} : vector<2x512xf32> to vector<2x128xf32>
    %160 = math.tanh %159 : vector<2x128xf32>
    %161 = vector.extract_strided_slice %158 {offsets = [0, 0], sizes = [2, 128], strides = [1, 1]} : vector<2x384xf32> to vector<2x128xf32>
    %162 = vector.extract_strided_slice %158 {offsets = [0, 128], sizes = [2, 128], strides = [1, 1]} : vector<2x384xf32> to vector<2x128xf32>
    %163 = vector.extract_strided_slice %158 {offsets = [0, 256], sizes = [2, 128], strides = [1, 1]} : vector<2x384xf32> to vector<2x128xf32>
    %164 = arith.mulf %162, %146 : vector<2x128xf32>
    %165 = arith.mulf %161, %160 : vector<2x128xf32>
    %166 = arith.addf %164, %165 : vector<2x128xf32>
    %167 = math.tanh %166 : vector<2x128xf32>
    %168 = arith.mulf %163, %167 : vector<2x128xf32>
    %169 = arith.truncf %168 : vector<2x128xf32> to vector<2x128xbf16>
    %c0_25 = arith.constant 0 : index
    %c0_26 = arith.constant 0 : index
    %170 = vector.load %arg4[%c0_25, %c0_26] : memref<128x128xbf16, #tpu.memory_space<vmem>>, vector<128x128xbf16>
    %cst_27 = arith.constant dense<0.000000e+00> : vector<2x128xf32>
    %171 = tpu.matmul %169, %170, %cst_27 {dimension_numbers = #tpu.dot_dimension_numbers<[1], [0], [0], [1], [0, 0, 1, 1], [], []>} : vector<2x128xbf16>, vector<128x128xbf16>, vector<2x128xf32> -> vector<2x128xf32>
    %c0_28 = arith.constant 0 : index
    %c0_29 = arith.constant 0 : index
    %172 = vector.load %arg5[%c0_28, %c0_29] : memref<1x128xf32, #tpu.memory_space<vmem>>, vector<1x128xf32>
    %173 = vector.broadcast %172 : vector<1x128xf32> to vector<2x128xf32>
    %174 = arith.addf %171, %173 : vector<2x128xf32>
    %cst_30 = arith.constant 0.000000e+00 : f32
    %175 = vector.broadcast %cst_30 : f32 to vector<2x128xf32>
    %176 = arith.maximumf %174, %175 : vector<2x128xf32>
    %c0_31 = arith.constant 0 : index
    %c0_32 = arith.constant 0 : index
    %177 = vector.load %arg6[%c0_31, %c0_32] : memref<1x128xf32, #tpu.memory_space<vmem>>, vector<1x128xf32>
    %178 = vector.broadcast %177 : vector<1x128xf32> to vector<2x128xf32>
    %179 = arith.mulf %176, %178 : vector<2x128xf32>
    %cst_33 = arith.constant dense<0.000000e+00> : vector<2xf32>
    %180 = vector.multi_reduction <add>, %179, %cst_33 [1] : vector<2x128xf32> to vector<2xf32>
    %181 = vector.shape_cast %180 : vector<2xf32> to vector<2x1xf32>
    %c0_34 = arith.constant 0 : index
    %c0_35 = arith.constant 0 : index
    %182 = vector.load %arg7[%c0_34, %c0_35] : memref<1x1xf32, #tpu.memory_space<vmem>>, vector<1x1xf32>
    %183 = vector.broadcast %182 : vector<1x1xf32> to vector<2x1xf32>
    %184 = arith.addf %181, %183 : vector<2x1xf32>
    %c0_36 = arith.constant 0 : index
    %c0_37 = arith.constant 0 : index
    %185 = vector.load %arg8[%c0_36, %c0_37] : memref<2x1xf32, #tpu.memory_space<vmem>>, vector<2x1xf32>
    tpu.vector_store %arg8[%c0_36, %c0_37], %184 {strides = array<i32>} : memref<2x1xf32, #tpu.memory_space<vmem>>, vector<2x1xf32>,
    return
  }
}

</mosaic_0001>

<llo_original>
// kernel: tpu_custom_call.1
$region0: #{tpu_custom_call.1}
  #allocation0 [shape = 'u32[]', space=smem, size = 0x4, offset = 0x4, fixed_abs, tag = 'smem constant byte address 0x4 - core index']
  #allocation1 [shape = 'u32[144,128]{1,0:T(1,128)}', space=vmem, size = 0x12000, scoped, tag = 'internal scratch']
  #allocation2 [shape = 'f32[1,1]{1,0:T(1,128)S(1)}', space=vmem, size = 0x200, scoped, tag = 'scoped memory for tpu_custom_call.1']
  %s0 = inlined_call_operand.hbm [shape: bf16[16,16], index: 0, kind: input, shape index: {}]
  %s1 = inlined_call_operand.hbm [shape: bf16[16,512], index: 1, kind: input, shape index: {}]
  %s2 = inlined_call_operand.hbm [shape: bf16[128,512], index: 2, kind: input, shape index: {}]
  %s3 = inlined_call_operand.vmem [shape: f32[1,512], index: 3, kind: input, shape index: {}]
  %s4 = inlined_call_operand.hbm [shape: bf16[128,128], index: 4, kind: input, shape index: {}]
  %s5 = inlined_call_operand.vmem [shape: f32[1,128], index: 5, kind: input, shape index: {}]
  %s6 = inlined_call_operand.vmem [shape: f32[1,128], index: 6, kind: input, shape index: {}]
  %s7 = inlined_call_operand.<no memory space> [shape: f32[1,1], index: 7, kind: input, shape index: {}]
  %s8 = inlined_call_operand.vmem [shape: f32[2,1], index: 8, kind: output, shape index: {}]
  %s9 = sld [smem:[#allocation0]]
  $region58: #{tpu_custom_call.1} parent=0
    _
  %s11 = ssub.s32 1, %s9
  %s12 = scalar_select 0, %s11, %s9
  %v13 = vstv %s7
  %14 = vst [vmem:[#allocation2] sm:$0x1] %v13
  $region1: #{tpu_custom_call.1} parent=0
    #allocation3 [shape = 'u8[4096]{0}', space=vmem, size = 0x1000, scoped, tag = 'input window, operand 0, single buffered']
    #allocation4 [shape = 's32[1]{0}', space=sflag, size = 0x4, scoped, tag = 'scoped memory for tpu_custom_call.1']
    #allocation5 [shape = 'u8[16384]{0}', space=vmem, size = 0x4000, scoped, tag = 'input window, operand 1, single buffered']
    #allocation6 [shape = 's32[1]{0}', space=sflag, size = 0x4, scoped, tag = 'scoped memory for tpu_custom_call.1']
    #allocation7 [shape = 'u8[131072]{0}', space=vmem, size = 0x20000, scoped, tag = 'input window, operand 2, single buffered']
    #allocation8 [shape = 'u8[32768]{0}', space=vmem, size = 0x8000, scoped, tag = 'input window, operand 4, single buffered']
    #allocation9 [shape = 's32[1]{0}', space=sflag, size = 0x4, scoped, tag = 'scoped memory for tpu_custom_call.1']
    %15 = vsyncpa [#allocation4], 0
    %16 = vsyncpa [#allocation6], 0
    %17 = vsyncpa [#allocation9], 0
    // Predicated region
    $region2: #{tpu_custom_call.1} parent=1 // pred_check
      _
    $region3: #{tpu_custom_call.1} parent=1 // pred_check_branch
      %19 = sbr.rel (0) target = $region5
    $region4: #{tpu_custom_call.1} parent=1 // pred_region
      %s21 = ssub.s32 128, 128
      %22 = vsyncadd [#allocation4], %s21
      %s23 = sshll.u32 [#allocation3], 4
      %s24 = int_to_ptr.vmem [resolvable:$true] %s23
      %29 = dma.hbm_to_vmem [thread:$0]  %s0, 128, %s24, [#allocation4], 64, 64, 4
    $region5: #{tpu_custom_call.1} parent=1 // pred_fallthru
      _
    // Predicated region
    $region6: #{tpu_custom_call.1} parent=1 // pred_check
      _
    $region7: #{tpu_custom_call.1} parent=1 // pred_check_branch
      %31 = sbr.rel (0) target = $region9
    $region8: #{tpu_custom_call.1} parent=1 // pred_region
      %s33 = ssub.s32 512, 512
      %34 = vsyncadd [#allocation6], %s33
      %s35 = sshll.u32 [#allocation5], 4
      %s36 = int_to_ptr.vmem [resolvable:$true] %s35
      %41 = dma.hbm_to_vmem [thread:$0]  %s1, 512, %s36, [#allocation6], 256, 256, 16
    $region9: #{tpu_custom_call.1} parent=1 // pred_fallthru
      _
    // Predicated region
    $region10: #{tpu_custom_call.1} parent=1 // pred_check
      _
    $region11: #{tpu_custom_call.1} parent=1 // pred_check_branch
      %43 = sbr.rel (0) target = $region13
    $region12: #{tpu_custom_call.1} parent=1 // pred_region
      %s45 = ssub.s32 4096, 4096
      %46 = vsyncadd [#allocation6], %s45
      %s47 = sshll.u32 [#allocation7], 4
      %s48 = int_to_ptr.vmem [resolvable:$true] %s47
      %53 = dma.hbm_to_vmem [thread:$0]  %s2, 4096, %s48, [#allocation6], 256, 256, 16
    $region13: #{tpu_custom_call.1} parent=1 // pred_fallthru
      _
    // Predicated region
    $region14: #{tpu_custom_call.1} parent=1 // pred_check
      _
    $region15: #{tpu_custom_call.1} parent=1 // pred_check_branch
      %55 = sbr.rel (0) target = $region17
    $region16: #{tpu_custom_call.1} parent=1 // pred_region
      _
    $region17: #{tpu_custom_call.1} parent=1 // pred_fallthru
      _
    // Predicated region
    $region18: #{tpu_custom_call.1} parent=1 // pred_check
      _
    $region19: #{tpu_custom_call.1} parent=1 // pred_check_branch
      %57 = sbr.rel (0) target = $region21
    $region20: #{tpu_custom_call.1} parent=1 // pred_region
      %s59 = ssub.s32 1024, 1024
      %60 = vsyncadd [#allocation9], %s59
      %s61 = sshll.u32 [#allocation8], 4
      %s62 = int_to_ptr.vmem [resolvable:$true] %s61
      %67 = dma.hbm_to_vmem [thread:$0]  %s4, 1024, %s62, [#allocation9], 64, 64, 4
    $region21: #{tpu_custom_call.1} parent=1 // pred_fallthru
      _
    // Predicated region
    $region22: #{tpu_custom_call.1} parent=1 // pred_check
      _
    $region23: #{tpu_custom_call.1} parent=1 // pred_check_branch
      %69 = sbr.rel (0) target = $region25
    $region24: #{tpu_custom_call.1} parent=1 // pred_region
      _
    $region25: #{tpu_custom_call.1} parent=1 // pred_fallthru
      _
    // Predicated region
    $region26: #{tpu_custom_call.1} parent=1 // pred_check
      _
    $region27: #{tpu_custom_call.1} parent=1 // pred_check_branch
      %71 = sbr.rel (0) target = $region29
    $region28: #{tpu_custom_call.1} parent=1 // pred_region
      _
    $region29: #{tpu_custom_call.1} parent=1 // pred_fallthru
      _
    // Predicated region
    $region30: #{tpu_custom_call.1} parent=1 // pred_check
      _
    $region31: #{tpu_custom_call.1} parent=1 // pred_check_branch
      %73 = sbr.rel (0) target = $region33
    $region32: #{tpu_custom_call.1} parent=1 // pred_region
      _
    $region33: #{tpu_custom_call.1} parent=1 // pred_fallthru
      _
    // Predicated region
    $region34: #{tpu_custom_call.1} parent=1 // pred_check
      _
    $region35: #{tpu_custom_call.1} parent=1 // pred_check_branch
      %75 = sbr.rel (0) target = $region37
    $region36: #{tpu_custom_call.1} parent=1 // pred_region
      %76 = dma.done [#allocation4], 128
    $region37: #{tpu_custom_call.1} parent=1 // pred_fallthru
      _
    // Predicated region
    $region38: #{tpu_custom_call.1} parent=1 // pred_check
      _
    $region39: #{tpu_custom_call.1} parent=1 // pred_check_branch
      %78 = sbr.rel (0) target = $region41
    $region40: #{tpu_custom_call.1} parent=1 // pred_region
      %79 = dma.done [#allocation6], 512
    $region41: #{tpu_custom_call.1} parent=1 // pred_fallthru
      _
    // Predicated region
    $region42: #{tpu_custom_call.1} parent=1 // pred_check
      _
    $region43: #{tpu_custom_call.1} parent=1 // pred_check_branch
      %81 = sbr.rel (0) target = $region45
    $region44: #{tpu_custom_call.1} parent=1 // pred_region
      %82 = dma.done [#allocation6], 4096
    $region45: #{tpu_custom_call.1} parent=1 // pred_fallthru
      _
    // Predicated region
    $region46: #{tpu_custom_call.1} parent=1 // pred_check
      _
    $region47: #{tpu_custom_call.1} parent=1 // pred_check_branch
      %84 = sbr.rel (0) target = $region49
    $region48: #{tpu_custom_call.1} parent=1 // pred_region
      %85 = dma.done [#allocation9], 1024
    $region49: #{tpu_custom_call.1} parent=1 // pred_fallthru
      _
    %v87 = vld [vmem:[#allocation3] sm:$0xf]
    %v88 = vld [vmem:[#allocation3 + $0x4] sm:$0xf]
    %v89 = vld [vmem:[#allocation5] sm:$0xff]
    %v90 = vld [vmem:[#allocation5 + $0x8] sm:$0xff]
    %v91 = vld [vmem:[#allocation5 + $0x10] sm:$0xff]
    %v92 = vld [vmem:[#allocation5 + $0x18] sm:$0xff]
    %v93 = vld [vmem:[%s3] sm:$0xf]
    %v95 = vlaneseq
    %v96 = vshrl.u32 %v95, 7
    %v97 = vsub.s32 0, %v96
    %v98 = vrot.slane %v93, %v97
    %v99 = vlaneseq
    %v100 = vshrl.u32 %v99, 7
    %v101 = vsub.s32 1, %v100
    %v102 = vrot.slane %v93, %v101
    %v103 = vlaneseq
    %v104 = vshrl.u32 %v103, 7
    %v105 = vsub.s32 2, %v104
    %v106 = vrot.slane %v93, %v105
    %v107 = vlaneseq
    %v108 = vshrl.u32 %v107, 7
    %v109 = vsub.s32 3, %v108
    %v110 = vrot.slane %v93, %v109
    %v117 = vunpack.c.l.b16 %v87
    %v118 = vunpack.c.l.b16 %v88
    %v119 = vpack.c.b16 %v118, %v117
    %v124 = vunpack.c.l.b16 %v89
    %v125 = vunpack.c.h.b16 %v89
    %v126 = vunpack.c.l.b16 %v90
    %v127 = vunpack.c.h.b16 %v90
    %v128 = vunpack.c.l.b16 %v91
    %v129 = vunpack.c.h.b16 %v91
    %v130 = vunpack.c.l.b16 %v92
    %v131 = vunpack.c.h.b16 %v92
    %v132 = vpack.c.b16 %v128, %v124
    %v133 = vpack.c.b16 %v129, %v125
    %v134 = vpack.c.b16 %v130, %v126
    %v135 = vpack.c.b16 %v131, %v127
    %vm140 = vcmask 130048
    %v142 = vsel %vm140, %v119, 0
    %144 = vmatprep.subr.bf16.mxu0 %v133
    %145 = vmatpush1.bf16.msra.mxu0 %v132
    %146 = vmatprep.subr.bf16.mxu0 0
    %147 = vmatpush1.bf16.msra.mxu0 0
    %148 = vmatprep.subr.bf16.mxu0 0
    %149 = vmatpush1.bf16.msra.mxu0 0
    %150 = vmatprep.subr.bf16.mxu0 0
    %151 = vmatpush1.bf16.msra.mxu0 0
    %152 = vmatprep.subr.bf16.mxu0 0
    %153 = vmatpush1.bf16.msra.mxu0 0
    %154 = vmatprep.subr.bf16.mxu0 0
    %155 = vmatpush1.bf16.msra.mxu0 0
    %156 = vmatprep.subr.bf16.mxu0 0
    %157 = vmatpush1.bf16.msra.mxu0 0
    %158 = vmatprep.subr.bf16.mxu0 0
    %159 = vmatpush1.bf16.msra.mxu0 0
    %160 = vmatprep.subr.bf16.mxu0 0
    %161 = vmatpush1.bf16.msra.mxu0 0
    %162 = vmatprep.subr.bf16.mxu0 0
    %163 = vmatpush1.bf16.msra.mxu0 0
    %164 = vmatprep.subr.bf16.mxu0 0
    %165 = vmatpush1.bf16.msra.mxu0 0
    %166 = vmatprep.subr.bf16.mxu0 0
    %167 = vmatpush1.bf16.msra.mxu0 0
    %168 = vmatprep.subr.bf16.mxu0 0
    %169 = vmatpush1.bf16.msra.mxu0 0
    %170 = vmatprep.subr.bf16.mxu0 0
    %171 = vmatpush1.bf16.msra.mxu0 0
    %172 = vmatprep.subr.bf16.mxu0 0
    %173 = vmatpush1.bf16.msra.mxu0 0
    %174 = vmatprep.subr.bf16.mxu0 0
    %175 = vmatpush1.bf16.msra.mxu0 0
    %176 = vmatprep.mubr.bf16.mxu0 0
    %177 = vmatmul.mubr.bf16.gmra.mrb[0].mxu0 %v142
    %v178 = vpop.f32.mrb[0].mxu0
    %v179 = vadd.f32 %v98, %v178
    %v180 = vpop.f32.mrb[0].mxu0
    %v181 = vadd.f32 %v102, %v180
    %v182 = vpop.f32.mrb[0].mxu0
    %v183 = vadd.f32 %v98, %v182
    %v184 = vpop.f32.mrb[0].mxu0
    %v185 = vadd.f32 %v102, %v184
    %186 = vdwg.mxu0
    %187 = vmatprep.subr.bf16.mxu0 %v135
    %188 = vmatpush1.bf16.msra.mxu0 %v134
    %189 = vmatprep.subr.bf16.mxu0 0
    %190 = vmatpush1.bf16.msra.mxu0 0
    %191 = vmatprep.subr.bf16.mxu0 0
    %192 = vmatpush1.bf16.msra.mxu0 0
    %193 = vmatprep.subr.bf16.mxu0 0
    %194 = vmatpush1.bf16.msra.mxu0 0
    %195 = vmatprep.subr.bf16.mxu0 0
    %196 = vmatpush1.bf16.msra.mxu0 0
    %197 = vmatprep.subr.bf16.mxu0 0
    %198 = vmatpush1.bf16.msra.mxu0 0
    %199 = vmatprep.subr.bf16.mxu0 0
    %200 = vmatpush1.bf16.msra.mxu0 0
    %201 = vmatprep.subr.bf16.mxu0 0
    %202 = vmatpush1.bf16.msra.mxu0 0
    %203 = vmatprep.subr.bf16.mxu0 0
    %204 = vmatpush1.bf16.msra.mxu0 0
    %205 = vmatprep.subr.bf16.mxu0 0
    %206 = vmatpush1.bf16.msra.mxu0 0
    %207 = vmatprep.subr.bf16.mxu0 0
    %208 = vmatpush1.bf16.msra.mxu0 0
    %209 = vmatprep.subr.bf16.mxu0 0
    %210 = vmatpush1.bf16.msra.mxu0 0
    %211 = vmatprep.subr.bf16.mxu0 0
    %212 = vmatpush1.bf16.msra.mxu0 0
    %213 = vmatprep.subr.bf16.mxu0 0
    %214 = vmatpush1.bf16.msra.mxu0 0
    %215 = vmatprep.subr.bf16.mxu0 0
    %216 = vmatpush1.bf16.msra.mxu0 0
    %217 = vmatprep.subr.bf16.mxu0 0
    %218 = vmatpush1.bf16.msra.mxu0 0
    %219 = vmatprep.mubr.bf16.mxu0 0
    %220 = vmatmul.mubr.bf16.gmra.mrb[0].mxu0 %v142
    %v221 = vpop.f32.mrb[0].mxu0
    %v222 = vadd.f32 %v106, %v221
    %v223 = vpop.f32.mrb[0].mxu0
    %v224 = vadd.f32 %v110, %v223
    %v225 = vpop.f32.mrb[0].mxu0
    %v226 = vadd.f32 %v106, %v225
    %v227 = vpop.f32.mrb[0].mxu0
    %v228 = vadd.f32 %v110, %v227
    %229 = vdwg.mxu0
    %v230 = vld [vmem:[#allocation7] sm:$0xff]
    %v231 = vld [vmem:[#allocation7 + $0x8] sm:$0xff]
    %v232 = vld [vmem:[#allocation7 + $0x10] sm:$0xff]
    %v233 = vld [vmem:[#allocation7 + $0x18] sm:$0xff]
    %v234 = vld [vmem:[#allocation7 + $0x20] sm:$0xff]
    %v235 = vld [vmem:[#allocation7 + $0x28] sm:$0xff]
    %v236 = vld [vmem:[#allocation7 + $0x30] sm:$0xff]
    %v237 = vld [vmem:[#allocation7 + $0x38] sm:$0xff]
    %v238 = vld [vmem:[#allocation7 + $0x40] sm:$0xff]
    %v239 = vld [vmem:[#allocation7 + $0x48] sm:$0xff]
    %v240 = vld [vmem:[#allocation7 + $0x50] sm:$0xff]
    %v241 = vld [vmem:[#allocation7 + $0x58] sm:$0xff]
    %v242 = vld [vmem:[#allocation7 + $0x60] sm:$0xff]
    %v243 = vld [vmem:[#allocation7 + $0x68] sm:$0xff]
    %v244 = vld [vmem:[#allocation7 + $0x70] sm:$0xff]
    %v245 = vld [vmem:[#allocation7 + $0x78] sm:$0xff]
    %v246 = vld [vmem:[#allocation7 + $0x80] sm:$0xff]
    %v247 = vld [vmem:[#allocation7 + $0x88] sm:$0xff]
    %v248 = vld [vmem:[#allocation7 + $0x90] sm:$0xff]
    %v249 = vld [vmem:[#allocation7 + $0x98] sm:$0xff]
    %v250 = vld [vmem:[#allocation7 + $0xa0] sm:$0xff]
    %v251 = vld [vmem:[#allocation7 + $0xa8] sm:$0xff]
    %v252 = vld [vmem:[#allocation7 + $0xb0] sm:$0xff]
    %v253 = vld [vmem:[#allocation7 + $0xb8] sm:$0xff]
    %v254 = vld [vmem:[#allocation7 + $0xc0] sm:$0xff]
    %v255 = vld [vmem:[#allocation7 + $0xc8] sm:$0xff]
    %v256 = vld [vmem:[#allocation7 + $0xd0] sm:$0xff]
    %v257 = vld [vmem:[#allocation7 + $0xd8] sm:$0xff]
    %v258 = vld [vmem:[#allocation7 + $0xe0] sm:$0xff]
    %v259 = vld [vmem:[#allocation7 + $0xe8] sm:$0xff]
    %v260 = vld [vmem:[#allocation7 + $0xf0] sm:$0xff]
    %v261 = vld [vmem:[#allocation7 + $0xf8] sm:$0xff]
    %v294 = vunpack.c.l.b16 %v230
    %v295 = vunpack.c.h.b16 %v230
    %v296 = vunpack.c.l.b16 %v231
    %v297 = vunpack.c.h.b16 %v231
    %v298 = vunpack.c.l.b16 %v232
    %v299 = vunpack.c.h.b16 %v232
    %v300 = vunpack.c.l.b16 %v233
    %v301 = vunpack.c.h.b16 %v233
    %v302 = vunpack.c.l.b16 %v234
    %v303 = vunpack.c.h.b16 %v234
    %v304 = vunpack.c.l.b16 %v235
    %v305 = vunpack.c.h.b16 %v235
    %v306 = vunpack.c.l.b16 %v236
    %v307 = vunpack.c.h.b16 %v236
    %v308 = vunpack.c.l.b16 %v237
    %v309 = vunpack.c.h.b16 %v237
    %v310 = vunpack.c.l.b16 %v238
    %v311 = vunpack.c.h.b16 %v238
    %v312 = vunpack.c.l.b16 %v239
    %v313 = vunpack.c.h.b16 %v239
    %v314 = vunpack.c.l.b16 %v240
    %v315 = vunpack.c.h.b16 %v240
    %v316 = vunpack.c.l.b16 %v241
    %v317 = vunpack.c.h.b16 %v241
    %v318 = vunpack.c.l.b16 %v242
    %v319 = vunpack.c.h.b16 %v242
    %v320 = vunpack.c.l.b16 %v243
    %v321 = vunpack.c.h.b16 %v243
    %v322 = vunpack.c.l.b16 %v244
    %v323 = vunpack.c.h.b16 %v244
    %v324 = vunpack.c.l.b16 %v245
    %v325 = vunpack.c.h.b16 %v245
    %v326 = vunpack.c.l.b16 %v246
    %v327 = vunpack.c.h.b16 %v246
    %v328 = vunpack.c.l.b16 %v247
    %v329 = vunpack.c.h.b16 %v247
    %v330 = vunpack.c.l.b16 %v248
    %v331 = vunpack.c.h.b16 %v248
    %v332 = vunpack.c.l.b16 %v249
    %v333 = vunpack.c.h.b16 %v249
    %v334 = vunpack.c.l.b16 %v250
    %v335 = vunpack.c.h.b16 %v250
    %v336 = vunpack.c.l.b16 %v251
    %v337 = vunpack.c.h.b16 %v251
    %v338 = vunpack.c.l.b16 %v252
    %v339 = vunpack.c.h.b16 %v252
    %v340 = vunpack.c.l.b16 %v253
    %v341 = vunpack.c.h.b16 %v253
    %v342 = vunpack.c.l.b16 %v254
    %v343 = vunpack.c.h.b16 %v254
    %v344 = vunpack.c.l.b16 %v255
    %v345 = vunpack.c.h.b16 %v255
    %v346 = vunpack.c.l.b16 %v256
    %v347 = vunpack.c.h.b16 %v256
    %v348 = vunpack.c.l.b16 %v257
    %v349 = vunpack.c.h.b16 %v257
    %v350 = vunpack.c.l.b16 %v258
    %v351 = vunpack.c.h.b16 %v258
    %v352 = vunpack.c.l.b16 %v259
    %v353 = vunpack.c.h.b16 %v259
    %v354 = vunpack.c.l.b16 %v260
    %v355 = vunpack.c.h.b16 %v260
    %v356 = vunpack.c.l.b16 %v261
    %v357 = vunpack.c.h.b16 %v261
    %v358 = vpack.c.b16 %v298, %v294
    %v359 = vpack.c.b16 %v299, %v295
    %v360 = vpack.c.b16 %v300, %v296
    %v361 = vpack.c.b16 %v301, %v297
    %v362 = vpack.c.b16 %v306, %v302
    %v363 = vpack.c.b16 %v307, %v303
    %v364 = vpack.c.b16 %v308, %v304
    %v365 = vpack.c.b16 %v309, %v305
    %v366 = vpack.c.b16 %v314, %v310
    %v367 = vpack.c.b16 %v315, %v311
    %v368 = vpack.c.b16 %v316, %v312
    %v369 = vpack.c.b16 %v317, %v313
    %v370 = vpack.c.b16 %v322, %v318
    %v371 = vpack.c.b16 %v323, %v319
    %v372 = vpack.c.b16 %v324, %v320
    %v373 = vpack.c.b16 %v325, %v321
    %v374 = vpack.c.b16 %v330, %v326
    %v375 = vpack.c.b16 %v331, %v327
    %v376 = vpack.c.b16 %v332, %v328
    %v377 = vpack.c.b16 %v333, %v329
    %v378 = vpack.c.b16 %v338, %v334
    %v379 = vpack.c.b16 %v339, %v335
    %v380 = vpack.c.b16 %v340, %v336
    %v381 = vpack.c.b16 %v341, %v337
    %v382 = vpack.c.b16 %v346, %v342
    %v383 = vpack.c.b16 %v347, %v343
    %v384 = vpack.c.b16 %v348, %v344
    %v385 = vpack.c.b16 %v349, %v345
    %v386 = vpack.c.b16 %v354, %v350
    %v387 = vpack.c.b16 %v355, %v351
    %v388 = vpack.c.b16 %v356, %v352
    %v389 = vpack.c.b16 %v357, %v353
    %422 = vmatprep.subr.bf16.mxu0 %v359
    %423 = vmatpush1.bf16.msra.mxu0 %v358
    %424 = vmatprep.subr.bf16.mxu0 %v363
    %425 = vmatpush1.bf16.msra.mxu0 %v362
    %426 = vmatprep.subr.bf16.mxu0 %v367
    %427 = vmatpush1.bf16.msra.mxu0 %v366
    %428 = vmatprep.subr.bf16.mxu0 %v371
    %429 = vmatpush1.bf16.msra.mxu0 %v370
    %430 = vmatprep.subr.bf16.mxu0 %v375
    %431 = vmatpush1.bf16.msra.mxu0 %v374
    %432 = vmatprep.subr.bf16.mxu0 %v379
    %433 = vmatpush1.bf16.msra.mxu0 %v378
    %434 = vmatprep.subr.bf16.mxu0 %v383
    %435 = vmatpush1.bf16.msra.mxu0 %v382
    %436 = vmatprep.subr.bf16.mxu0 %v387
    %437 = vmatpush1.bf16.msra.mxu0 %v386
    %438 = vmatprep.subr.bf16.mxu0 0
    %439 = vmatpush1.bf16.msra.mxu0 0
    %440 = vmatprep.subr.bf16.mxu0 0
    %441 = vmatpush1.bf16.msra.mxu0 0
    %442 = vmatprep.subr.bf16.mxu0 0
    %443 = vmatpush1.bf16.msra.mxu0 0
    %444 = vmatprep.subr.bf16.mxu0 0
    %445 = vmatpush1.bf16.msra.mxu0 0
    %446 = vmatprep.subr.bf16.mxu0 0
    %447 = vmatpush1.bf16.msra.mxu0 0
    %448 = vmatprep.subr.bf16.mxu0 0
    %449 = vmatpush1.bf16.msra.mxu0 0
    %450 = vmatprep.subr.bf16.mxu0 0
    %451 = vmatpush1.bf16.msra.mxu0 0
    %452 = vmatprep.subr.bf16.mxu0 0
    %453 = vmatpush1.bf16.msra.mxu0 0
    %454 = vmatprep.mubr.bf16.mxu0 0
    %455 = vmatmul.mubr.bf16.gmra.mrb[0].mxu0 0
    %v456 = vpop.f32.mrb[0].mxu0
    %v457 = vadd.f32 0.0, %v456
    %v458 = vpop.f32.mrb[0].mxu0
    %v459 = vadd.f32 0.0, %v458
    %v460 = vpop.f32.mrb[0].mxu0
    %v461 = vpop.f32.mrb[0].mxu0
    %462 = vdwg.mxu0
    %463 = vmatprep.subr.bf16.mxu0 %v361
    %464 = vmatpush1.bf16.msra.mxu0 %v360
    %465 = vmatprep.subr.bf16.mxu0 %v365
    %466 = vmatpush1.bf16.msra.mxu0 %v364
    %467 = vmatprep.subr.bf16.mxu0 %v369
    %468 = vmatpush1.bf16.msra.mxu0 %v368
    %469 = vmatprep.subr.bf16.mxu0 %v373
    %470 = vmatpush1.bf16.msra.mxu0 %v372
    %471 = vmatprep.subr.bf16.mxu0 %v377
    %472 = vmatpush1.bf16.msra.mxu0 %v376
    %473 = vmatprep.subr.bf16.mxu0 %v381
    %474 = vmatpush1.bf16.msra.mxu0 %v380
    %475 = vmatprep.subr.bf16.mxu0 %v385
    %476 = vmatpush1.bf16.msra.mxu0 %v384
    %477 = vmatprep.subr.bf16.mxu0 %v389
    %478 = vmatpush1.bf16.msra.mxu0 %v388
    %479 = vmatprep.subr.bf16.mxu0 0
    %480 = vmatpush1.bf16.msra.mxu0 0
    %481 = vmatprep.subr.bf16.mxu0 0
    %482 = vmatpush1.bf16.msra.mxu0 0
    %483 = vmatprep.subr.bf16.mxu0 0
    %484 = vmatpush1.bf16.msra.mxu0 0
    %485 = vmatprep.subr.bf16.mxu0 0
    %486 = vmatpush1.bf16.msra.mxu0 0
    %487 = vmatprep.subr.bf16.mxu0 0
    %488 = vmatpush1.bf16.msra.mxu0 0
    %489 = vmatprep.subr.bf16.mxu0 0
    %490 = vmatpush1.bf16.msra.mxu0 0
    %491 = vmatprep.subr.bf16.mxu0 0
    %492 = vmatpush1.bf16.msra.mxu0 0
    %493 = vmatprep.subr.bf16.mxu0 0
    %494 = vmatpush1.bf16.msra.mxu0 0
    %495 = vmatprep.mubr.bf16.mxu0 0
    %496 = vmatmul.mubr.bf16.gmra.mrb[0].mxu0 0
    %v497 = vpop.f32.mrb[0].mxu0
    %v498 = vadd.f32 0.0, %v497
    %v499 = vpop.f32.mrb[0].mxu0
    %v500 = vadd.f32 0.0, %v499
    %v501 = vpop.f32.mrb[0].mxu0
    %v502 = vpop.f32.mrb[0].mxu0
    %503 = vdwg.mxu0
    %v504 = vadd.f32 %v179, %v457
    %v505 = vadd.f32 %v181, %v459
    %v506 = vadd.f32 %v222, %v498
    %v507 = vadd.f32 %v224, %v500
    %v508 = vxor.u32 %v504, 2147483648
    %v509 = vxor.u32 %v505, 2147483648
    %v510 = vxor.u32 %v506, 2147483648
    %v511 = vmul.f32 %v508, 1.442695
    %v512 = vpow.pop %v511
    %v513 = vmul.f32 %v509, 1.442695
    %v514 = vpow.pop %v513
    %v515 = vmul.f32 %v510, 1.442695
    %v516 = vpow.pop %v515
    %v517 = vadd.f32 %v512, 1.0
    %v518 = vadd.f32 %v514, 1.0
    %v519 = vadd.f32 %v516, 1.0
    %v520 = vrcp.pop %v517
    %v521 = vmul.f32 1.0, %v520
    %v522 = vrcp.pop %v518
    %v523 = vmul.f32 1.0, %v522
    %v524 = vrcp.pop %v519
    %v525 = vmul.f32 1.0, %v524
    %v526 = vtanh.pop %v507
    %v527 = vmul.f32 %v523, 0.0
    %v528 = vmul.f32 %v521, %v526
    %v529 = vadd.f32 %v527, %v528
    %v530 = vtanh.pop %v529
    %v531 = vmul.f32 %v525, %v530
    %v532 = vpack.c.bf16 %v531, %v531
    %533 = vmatprep.subr.bf16.mxu0 %v359
    %534 = vmatpush1.bf16.msra.mxu0 %v358
    %535 = vmatprep.subr.bf16.mxu0 %v363
    %536 = vmatpush1.bf16.msra.mxu0 %v362
    %537 = vmatprep.subr.bf16.mxu0 %v367
    %538 = vmatpush1.bf16.msra.mxu0 %v366
    %539 = vmatprep.subr.bf16.mxu0 %v371
    %540 = vmatpush1.bf16.msra.mxu0 %v370
    %541 = vmatprep.subr.bf16.mxu0 %v375
    %542 = vmatpush1.bf16.msra.mxu0 %v374
    %543 = vmatprep.subr.bf16.mxu0 %v379
    %544 = vmatpush1.bf16.msra.mxu0 %v378
    %545 = vmatprep.subr.bf16.mxu0 %v383
    %546 = vmatpush1.bf16.msra.mxu0 %v382
    %547 = vmatprep.subr.bf16.mxu0 %v387
    %548 = vmatpush1.bf16.msra.mxu0 %v386
    %549 = vmatprep.subr.bf16.mxu0 0
    %550 = vmatpush1.bf16.msra.mxu0 0
    %551 = vmatprep.subr.bf16.mxu0 0
    %552 = vmatpush1.bf16.msra.mxu0 0
    %553 = vmatprep.subr.bf16.mxu0 0
    %554 = vmatpush1.bf16.msra.mxu0 0
    %555 = vmatprep.subr.bf16.mxu0 0
    %556 = vmatpush1.bf16.msra.mxu0 0
    %557 = vmatprep.subr.bf16.mxu0 0
    %558 = vmatpush1.bf16.msra.mxu0 0
    %559 = vmatprep.subr.bf16.mxu0 0
    %560 = vmatpush1.bf16.msra.mxu0 0
    %561 = vmatprep.subr.bf16.mxu0 0
    %562 = vmatpush1.bf16.msra.mxu0 0
    %563 = vmatprep.subr.bf16.mxu0 0
    %564 = vmatpush1.bf16.msra.mxu0 0
    %565 = vmatprep.mubr.bf16.mxu0 0
    %566 = vmatmul.mubr.bf16.gmra.mrb[0].mxu0 %v532
    %v567 = vpop.f32.mrb[0].mxu0
    %v568 = vadd.f32 0.0, %v567
    %v569 = vpop.f32.mrb[0].mxu0
    %v570 = vadd.f32 0.0, %v569
    %v571 = vpop.f32.mrb[0].mxu0
    %v572 = vpop.f32.mrb[0].mxu0
    %573 = vdwg.mxu0
    %574 = vmatprep.subr.bf16.mxu0 %v361
    %575 = vmatpush1.bf16.msra.mxu0 %v360
    %576 = vmatprep.subr.bf16.mxu0 %v365
    %577 = vmatpush1.bf16.msra.mxu0 %v364
    %578 = vmatprep.subr.bf16.mxu0 %v369
    %579 = vmatpush1.bf16.msra.mxu0 %v368
    %580 = vmatprep.subr.bf16.mxu0 %v373
    %581 = vmatpush1.bf16.msra.mxu0 %v372
    %582 = vmatprep.subr.bf16.mxu0 %v377
    %583 = vmatpush1.bf16.msra.mxu0 %v376
    %584 = vmatprep.subr.bf16.mxu0 %v381
    %585 = vmatpush1.bf16.msra.mxu0 %v380
    %586 = vmatprep.subr.bf16.mxu0 %v385
    %587 = vmatpush1.bf16.msra.mxu0 %v384
    %588 = vmatprep.subr.bf16.mxu0 %v389
    %589 = vmatpush1.bf16.msra.mxu0 %v388
    %590 = vmatprep.subr.bf16.mxu0 0
    %591 = vmatpush1.bf16.msra.mxu0 0
    %592 = vmatprep.subr.bf16.mxu0 0
    %593 = vmatpush1.bf16.msra.mxu0 0
    %594 = vmatprep.subr.bf16.mxu0 0
    %595 = vmatpush1.bf16.msra.mxu0 0
    %596 = vmatprep.subr.bf16.mxu0 0
    %597 = vmatpush1.bf16.msra.mxu0 0
    %598 = vmatprep.subr.bf16.mxu0 0
    %599 = vmatpush1.bf16.msra.mxu0 0
    %600 = vmatprep.subr.bf16.mxu0 0
    %601 = vmatpush1.bf16.msra.mxu0 0
    %602 = vmatprep.subr.bf16.mxu0 0
    %603 = vmatpush1.bf16.msra.mxu0 0
    %604 = vmatprep.subr.bf16.mxu0 0
    %605 = vmatpush1.bf16.msra.mxu0 0
    %606 = vmatprep.mubr.bf16.mxu0 0
    %607 = vmatmul.mubr.bf16.gmra.mrb[0].mxu0 %v532
    %v608 = vpop.f32.mrb[0].mxu0
    %v609 = vadd.f32 0.0, %v608
    %v610 = vpop.f32.mrb[0].mxu0
    %v611 = vadd.f32 0.0, %v610
    %v612 = vpop.f32.mrb[0].mxu0
    %v613 = vpop.f32.mrb[0].mxu0
    %614 = vdwg.mxu0
    %v619 = vrot.slane %v568, 6
    %v620 = vrot.slane %v570, 6
    %v621 = vrot.slane %v609, 6
    %v622 = vrot.slane %v611, 6
    %v627 = vadd.f32 %v179, %v619
    %v628 = vadd.f32 %v181, %v620
    %v629 = vadd.f32 %v222, %v621
    %v630 = vadd.f32 %v224, %v622
    %v631 = vxor.u32 %v627, 2147483648
    %v632 = vxor.u32 %v628, 2147483648
    %v633 = vxor.u32 %v629, 2147483648
    %v634 = vmul.f32 %v631, 1.442695
    %v635 = vpow.pop %v634
    %v636 = vmul.f32 %v632, 1.442695
    %v637 = vpow.pop %v636
    %v638 = vmul.f32 %v633, 1.442695
    %v639 = vpow.pop %v638
    %v640 = vadd.f32 %v635, 1.0
    %v641 = vadd.f32 %v637, 1.0
    %v642 = vadd.f32 %v639, 1.0
    %v643 = vrcp.pop %v640
    %v644 = vmul.f32 1.0, %v643
    %v645 = vrcp.pop %v641
    %v646 = vmul.f32 1.0, %v645
    %v647 = vrcp.pop %v642
    %v648 = vmul.f32 1.0, %v647
    %v649 = vtanh.pop %v630
    %v651 = vrot.slane %v529, 6
    %v653 = vmul.f32 %v646, %v651
    %v654 = vmul.f32 %v644, %v649
    %v655 = vadd.f32 %v653, %v654
    %v656 = vtanh.pop %v655
    %v657 = vmul.f32 %v648, %v656
    %v658 = vpack.c.bf16 %v657, %v657
    %v660 = vrot.slane %v658, 1
    %662 = vmatprep.subr.bf16.mxu0 %v359
    %663 = vmatpush1.bf16.msra.mxu0 %v358
    %664 = vmatprep.subr.bf16.mxu0 %v363
    %665 = vmatpush1.bf16.msra.mxu0 %v362
    %666 = vmatprep.subr.bf16.mxu0 %v367
    %667 = vmatpush1.bf16.msra.mxu0 %v366
    %668 = vmatprep.subr.bf16.mxu0 %v371
    %669 = vmatpush1.bf16.msra.mxu0 %v370
    %670 = vmatprep.subr.bf16.mxu0 %v375
    %671 = vmatpush1.bf16.msra.mxu0 %v374
    %672 = vmatprep.subr.bf16.mxu0 %v379
    %673 = vmatpush1.bf16.msra.mxu0 %v378
    %674 = vmatprep.subr.bf16.mxu0 %v383
    %675 = vmatpush1.bf16.msra.mxu0 %v382
    %676 = vmatprep.subr.bf16.mxu0 %v387
    %677 = vmatpush1.bf16.msra.mxu0 %v386
    %678 = vmatprep.subr.bf16.mxu0 0
    %679 = vmatpush1.bf16.msra.mxu0 0
    %680 = vmatprep.subr.bf16.mxu0 0
    %681 = vmatpush1.bf16.msra.mxu0 0
    %682 = vmatprep.subr.bf16.mxu0 0
    %683 = vmatpush1.bf16.msra.mxu0 0
    %684 = vmatprep.subr.bf16.mxu0 0
    %685 = vmatpush1.bf16.msra.mxu0 0
    %686 = vmatprep.subr.bf16.mxu0 0
    %687 = vmatpush1.bf16.msra.mxu0 0
    %688 = vmatprep.subr.bf16.mxu0 0
    %689 = vmatpush1.bf16.msra.mxu0 0
    %690 = vmatprep.subr.bf16.mxu0 0
    %691 = vmatpush1.bf16.msra.mxu0 0
    %692 = vmatprep.subr.bf16.mxu0 0
    %693 = vmatpush1.bf16.msra.mxu0 0
    %694 = vmatprep.mubr.bf16.mxu0 0
    %695 = vmatmul.mubr.bf16.gmra.mrb[0].mxu0 %v660
    %v696 = vpop.f32.mrb[0].mxu0
    %v697 = vadd.f32 0.0, %v696
    %v698 = vpop.f32.mrb[0].mxu0
    %v699 = vadd.f32 0.0, %v698
    %v700 = vpop.f32.mrb[0].mxu0
    %v701 = vpop.f32.mrb[0].mxu0
    %702 = vdwg.mxu0
    %703 = vmatprep.subr.bf16.mxu0 %v361
    %704 = vmatpush1.bf16.msra.mxu0 %v360
    %705 = vmatprep.subr.bf16.mxu0 %v365
    %706 = vmatpush1.bf16.msra.mxu0 %v364
    %707 = vmatprep.subr.bf16.mxu0 %v369
    %708 = vmatpush1.bf16.msra.mxu0 %v368
    %709 = vmatprep.subr.bf16.mxu0 %v373
    %710 = vmatpush1.bf16.msra.mxu0 %v372
    %711 = vmatprep.subr.bf16.mxu0 %v377
    %712 = vmatpush1.bf16.msra.mxu0 %v376
    %713 = vmatprep.subr.bf16.mxu0 %v381
    %714 = vmatpush1.bf16.msra.mxu0 %v380
    %715 = vmatprep.subr.bf16.mxu0 %v385
    %716 = vmatpush1.bf16.msra.mxu0 %v384
    %717 = vmatprep.subr.bf16.mxu0 %v389
    %718 = vmatpush1.bf16.msra.mxu0 %v388
    %719 = vmatprep.subr.bf16.mxu0 0
    %720 = vmatpush1.bf16.msra.mxu0 0
    %721 = vmatprep.subr.bf16.mxu0 0
    %722 = vmatpush1.bf16.msra.mxu0 0
    %723 = vmatprep.subr.bf16.mxu0 0
    %724 = vmatpush1.bf16.msra.mxu0 0
    %725 = vmatprep.subr.bf16.mxu0 0
    %726 = vmatpush1.bf16.msra.mxu0 0
    %727 = vmatprep.subr.bf16.mxu0 0
    %728 = vmatpush1.bf16.msra.mxu0 0
    %729 = vmatprep.subr.bf16.mxu0 0
    %730 = vmatpush1.bf16.msra.mxu0 0
    %731 = vmatprep.subr.bf16.mxu0 0
    %732 = vmatpush1.bf16.msra.mxu0 0
    %733 = vmatprep.subr.bf16.mxu0 0
    %734 = vmatpush1.bf16.msra.mxu0 0
    %735 = vmatprep.mubr.bf16.mxu0 0
    %736 = vmatmul.mubr.bf16.gmra.mrb[0].mxu0 %v660
    %v737 = vpop.f32.mrb[0].mxu0
    %v738 = vadd.f32 0.0, %v737
    %v739 = vpop.f32.mrb[0].mxu0
    %v740 = vadd.f32 0.0, %v739
    %v741 = vpop.f32.mrb[0].mxu0
    %v742 = vpop.f32.mrb[0].mxu0
    %743 = vdwg.mxu0
    %v748 = vrot.slane %v697, 4
    %v749 = vrot.slane %v699, 4
    %v750 = vrot.slane %v738, 4
    %v751 = vrot.slane %v740, 4
    %v756 = vadd.f32 %v179, %v748
    %v757 = vadd.f32 %v181, %v749
    %v758 = vadd.f32 %v222, %v750
    %v759 = vadd.f32 %v224, %v751
    %v760 = vxor.u32 %v756, 2147483648
    %v761 = vxor.u32 %v757, 2147483648
    %v762 = vxor.u32 %v758, 2147483648
    %v763 = vmul.f32 %v760, 1.442695
    %v764 = vpow.pop %v763
    %v765 = vmul.f32 %v761, 1.442695
    %v766 = vpow.pop %v765
    %v767 = vmul.f32 %v762, 1.442695
    %v768 = vpow.pop %v767
    %v769 = vadd.f32 %v764, 1.0
    %v770 = vadd.f32 %v766, 1.0
    %v771 = vadd.f32 %v768, 1.0
    %v772 = vrcp.pop %v769
    %v773 = vmul.f32 1.0, %v772
    %v774 = vrcp.pop %v770
    %v775 = vmul.f32 1.0, %v774
    %v776 = vrcp.pop %v771
    %v777 = vmul.f32 1.0, %v776
    %v778 = vtanh.pop %v759
    %v780 = vrot.slane %v655, 6
    %v782 = vmul.f32 %v775, %v780
    %v783 = vmul.f32 %v773, %v778
    %v784 = vadd.f32 %v782, %v783
    %v785 = vtanh.pop %v784
    %v786 = vmul.f32 %v777, %v785
    %v787 = vpack.c.bf16 %v786, %v786
    %v789 = vrot.slane %v787, 2
    %791 = vmatprep.subr.bf16.mxu0 %v359
    %792 = vmatpush1.bf16.msra.mxu0 %v358
    %793 = vmatprep.subr.bf16.mxu0 %v363
    %794 = vmatpush1.bf16.msra.mxu0 %v362
    %795 = vmatprep.subr.bf16.mxu0 %v367
    %796 = vmatpush1.bf16.msra.mxu0 %v366
    %797 = vmatprep.subr.bf16.mxu0 %v371
    %798 = vmatpush1.bf16.msra.mxu0 %v370
    %799 = vmatprep.subr.bf16.mxu0 %v375
    %800 = vmatpush1.bf16.msra.mxu0 %v374
    %801 = vmatprep.subr.bf16.mxu0 %v379
    %802 = vmatpush1.bf16.msra.mxu0 %v378
    %803 = vmatprep.subr.bf16.mxu0 %v383
    %804 = vmatpush1.bf16.msra.mxu0 %v382
    %805 = vmatprep.subr.bf16.mxu0 %v387
    %806 = vmatpush1.bf16.msra.mxu0 %v386
    %807 = vmatprep.subr.bf16.mxu0 0
    %808 = vmatpush1.bf16.msra.mxu0 0
    %809 = vmatprep.subr.bf16.mxu0 0
    %810 = vmatpush1.bf16.msra.mxu0 0
    %811 = vmatprep.subr.bf16.mxu0 0
    %812 = vmatpush1.bf16.msra.mxu0 0
    %813 = vmatprep.subr.bf16.mxu0 0
    %814 = vmatpush1.bf16.msra.mxu0 0
    %815 = vmatprep.subr.bf16.mxu0 0
    %816 = vmatpush1.bf16.msra.mxu0 0
    %817 = vmatprep.subr.bf16.mxu0 0
    %818 = vmatpush1.bf16.msra.mxu0 0
    %819 = vmatprep.subr.bf16.mxu0 0
    %820 = vmatpush1.bf16.msra.mxu0 0
    %821 = vmatprep.subr.bf16.mxu0 0
    %822 = vmatpush1.bf16.msra.mxu0 0
    %823 = vmatprep.mubr.bf16.mxu0 0
    %824 = vmatmul.mubr.bf16.gmra.mrb[0].mxu0 %v789
    %v825 = vpop.f32.mrb[0].mxu0
    %v826 = vadd.f32 0.0, %v825
    %v827 = vpop.f32.mrb[0].mxu0
    %v828 = vadd.f32 0.0, %v827
    %v829 = vpop.f32.mrb[0].mxu0
    %v830 = vpop.f32.mrb[0].mxu0
    %831 = vdwg.mxu0
    %832 = vmatprep.subr.bf16.mxu0 %v361
    %833 = vmatpush1.bf16.msra.mxu0 %v360
    %834 = vmatprep.subr.bf16.mxu0 %v365
    %835 = vmatpush1.bf16.msra.mxu0 %v364
    %836 = vmatprep.subr.bf16.mxu0 %v369
    %837 = vmatpush1.bf16.msra.mxu0 %v368
    %838 = vmatprep.subr.bf16.mxu0 %v373
    %839 = vmatpush1.bf16.msra.mxu0 %v372
    %840 = vmatprep.subr.bf16.mxu0 %v377
    %841 = vmatpush1.bf16.msra.mxu0 %v376
    %842 = vmatprep.subr.bf16.mxu0 %v381
    %843 = vmatpush1.bf16.msra.mxu0 %v380
    %844 = vmatprep.subr.bf16.mxu0 %v385
    %845 = vmatpush1.bf16.msra.mxu0 %v384
    %846 = vmatprep.subr.bf16.mxu0 %v389
    %847 = vmatpush1.bf16.msra.mxu0 %v388
    %848 = vmatprep.subr.bf16.mxu0 0
    %849 = vmatpush1.bf16.msra.mxu0 0
    %850 = vmatprep.subr.bf16.mxu0 0
    %851 = vmatpush1.bf16.msra.mxu0 0
    %852 = vmatprep.subr.bf16.mxu0 0
    %853 = vmatpush1.bf16.msra.mxu0 0
    %854 = vmatprep.subr.bf16.mxu0 0
    %855 = vmatpush1.bf16.msra.mxu0 0
    %856 = vmatprep.subr.bf16.mxu0 0
    %857 = vmatpush1.bf16.msra.mxu0 0
    %858 = vmatprep.subr.bf16.mxu0 0
    %859 = vmatpush1.bf16.msra.mxu0 0
    %860 = vmatprep.subr.bf16.mxu0 0
    %861 = vmatpush1.bf16.msra.mxu0 0
    %862 = vmatprep.subr.bf16.mxu0 0
    %863 = vmatpush1.bf16.msra.mxu0 0
    %864 = vmatprep.mubr.bf16.mxu0 0
    %865 = vmatmul.mubr.bf16.gmra.mrb[0].mxu0 %v789
    %v866 = vpop.f32.mrb[0].mxu0
    %v867 = vadd.f32 0.0, %v866
    %v868 = vpop.f32.mrb[0].mxu0
    %v869 = vadd.f32 0.0, %v868
    %v870 = vpop.f32.mrb[0].mxu0
    %v871 = vpop.f32.mrb[0].mxu0
    %872 = vdwg.mxu0
    %v877 = vrot.slane %v826, 2
    %v878 = vrot.slane %v828, 2
    %v879 = vrot.slane %v867, 2
    %v880 = vrot.slane %v869, 2
    %v885 = vadd.f32 %v179, %v877
    %v886 = vadd.f32 %v181, %v878
    %v887 = vadd.f32 %v222, %v879
    %v888 = vadd.f32 %v224, %v880
    %v889 = vxor.u32 %v885, 2147483648
    %v890 = vxor.u32 %v886, 2147483648
    %v891 = vxor.u32 %v887, 2147483648
    %v892 = vmul.f32 %v889, 1.442695
    %v893 = vpow.pop %v892
    %v894 = vmul.f32 %v890, 1.442695
    %v895 = vpow.pop %v894
    %v896 = vmul.f32 %v891, 1.442695
    %v897 = vpow.pop %v896
    %v898 = vadd.f32 %v893, 1.0
    %v899 = vadd.f32 %v895, 1.0
    %v900 = vadd.f32 %v897, 1.0
    %v901 = vrcp.pop %v898
    %v902 = vmul.f32 1.0, %v901
    %v903 = vrcp.pop %v899
    %v904 = vmul.f32 1.0, %v903
    %v905 = vrcp.pop %v900
    %v906 = vmul.f32 1.0, %v905
    %v907 = vtanh.pop %v888
    %v909 = vrot.slane %v784, 6
    %v911 = vmul.f32 %v904, %v909
    %v912 = vmul.f32 %v902, %v907
    %v913 = vadd.f32 %v911, %v912
    %v914 = vtanh.pop %v913
    %v915 = vmul.f32 %v906, %v914
    %v916 = vpack.c.bf16 %v915, %v915
    %v918 = vrot.slane %v916, 3
    %920 = vmatprep.subr.bf16.mxu0 %v359
    %921 = vmatpush1.bf16.msra.mxu0 %v358
    %922 = vmatprep.subr.bf16.mxu0 %v363
    %923 = vmatpush1.bf16.msra.mxu0 %v362
    %924 = vmatprep.subr.bf16.mxu0 %v367
    %925 = vmatpush1.bf16.msra.mxu0 %v366
    %926 = vmatprep.subr.bf16.mxu0 %v371
    %927 = vmatpush1.bf16.msra.mxu0 %v370
    %928 = vmatprep.subr.bf16.mxu0 %v375
    %929 = vmatpush1.bf16.msra.mxu0 %v374
    %930 = vmatprep.subr.bf16.mxu0 %v379
    %931 = vmatpush1.bf16.msra.mxu0 %v378
    %932 = vmatprep.subr.bf16.mxu0 %v383
    %933 = vmatpush1.bf16.msra.mxu0 %v382
    %934 = vmatprep.subr.bf16.mxu0 %v387
    %935 = vmatpush1.bf16.msra.mxu0 %v386
    %936 = vmatprep.subr.bf16.mxu0 0
    %937 = vmatpush1.bf16.msra.mxu0 0
    %938 = vmatprep.subr.bf16.mxu0 0
    %939 = vmatpush1.bf16.msra.mxu0 0
    %940 = vmatprep.subr.bf16.mxu0 0
    %941 = vmatpush1.bf16.msra.mxu0 0
    %942 = vmatprep.subr.bf16.mxu0 0
    %943 = vmatpush1.bf16.msra.mxu0 0
    %944 = vmatprep.subr.bf16.mxu0 0
    %945 = vmatpush1.bf16.msra.mxu0 0
    %946 = vmatprep.subr.bf16.mxu0 0
    %947 = vmatpush1.bf16.msra.mxu0 0
    %948 = vmatprep.subr.bf16.mxu0 0
    %949 = vmatpush1.bf16.msra.mxu0 0
    %950 = vmatprep.subr.bf16.mxu0 0
    %951 = vmatpush1.bf16.msra.mxu0 0
    %952 = vmatprep.mubr.bf16.mxu0 0
    %953 = vmatmul.mubr.bf16.gmra.mrb[0].mxu0 %v918
    %v954 = vpop.f32.mrb[0].mxu0
    %v955 = vadd.f32 0.0, %v954
    %v956 = vpop.f32.mrb[0].mxu0
    %v957 = vadd.f32 0.0, %v956
    %v958 = vpop.f32.mrb[0].mxu0
    %v959 = vpop.f32.mrb[0].mxu0
    %960 = vdwg.mxu0
    %961 = vmatprep.subr.bf16.mxu0 %v361
    %962 = vmatpush1.bf16.msra.mxu0 %v360
    %963 = vmatprep.subr.bf16.mxu0 %v365
    %964 = vmatpush1.bf16.msra.mxu0 %v364
    %965 = vmatprep.subr.bf16.mxu0 %v369
    %966 = vmatpush1.bf16.msra.mxu0 %v368
    %967 = vmatprep.subr.bf16.mxu0 %v373
    %968 = vmatpush1.bf16.msra.mxu0 %v372
    %969 = vmatprep.subr.bf16.mxu0 %v377
    %970 = vmatpush1.bf16.msra.mxu0 %v376
    %971 = vmatprep.subr.bf16.mxu0 %v381
    %972 = vmatpush1.bf16.msra.mxu0 %v380
    %973 = vmatprep.subr.bf16.mxu0 %v385
    %974 = vmatpush1.bf16.msra.mxu0 %v384
    %975 = vmatprep.subr.bf16.mxu0 %v389
    %976 = vmatpush1.bf16.msra.mxu0 %v388
    %977 = vmatprep.subr.bf16.mxu0 0
    %978 = vmatpush1.bf16.msra.mxu0 0
    %979 = vmatprep.subr.bf16.mxu0 0
    %980 = vmatpush1.bf16.msra.mxu0 0
    %981 = vmatprep.subr.bf16.mxu0 0
    %982 = vmatpush1.bf16.msra.mxu0 0
    %983 = vmatprep.subr.bf16.mxu0 0
    %984 = vmatpush1.bf16.msra.mxu0 0
    %985 = vmatprep.subr.bf16.mxu0 0
    %986 = vmatpush1.bf16.msra.mxu0 0
    %987 = vmatprep.subr.bf16.mxu0 0
    %988 = vmatpush1.bf16.msra.mxu0 0
    %989 = vmatprep.subr.bf16.mxu0 0
    %990 = vmatpush1.bf16.msra.mxu0 0
    %991 = vmatprep.subr.bf16.mxu0 0
    %992 = vmatpush1.bf16.msra.mxu0 0
    %993 = vmatprep.mubr.bf16.mxu0 0
    %994 = vmatmul.mubr.bf16.gmra.mrb[0].mxu0 %v918
    %v995 = vpop.f32.mrb[0].mxu0
    %v996 = vadd.f32 0.0, %v995
    %v997 = vpop.f32.mrb[0].mxu0
    %v998 = vadd.f32 0.0, %v997
    %v999 = vpop.f32.mrb[0].mxu0
    %v1000 = vpop.f32.mrb[0].mxu0
    %1001 = vdwg.mxu0
    %v1002 = vadd.f32 %v183, %v955
    %v1003 = vadd.f32 %v185, %v957
    %v1004 = vadd.f32 %v226, %v996
    %v1005 = vadd.f32 %v228, %v998
    %v1006 = vxor.u32 %v1002, 2147483648
    %v1007 = vxor.u32 %v1003, 2147483648
    %v1008 = vxor.u32 %v1004, 2147483648
    %v1009 = vmul.f32 %v1006, 1.442695
    %v1010 = vpow.pop %v1009
    %v1011 = vmul.f32 %v1007, 1.442695
    %v1012 = vpow.pop %v1011
    %v1013 = vmul.f32 %v1008, 1.442695
    %v1014 = vpow.pop %v1013
    %v1015 = vadd.f32 %v1010, 1.0
    %v1016 = vadd.f32 %v1012, 1.0
    %v1017 = vadd.f32 %v1014, 1.0
    %v1018 = vrcp.pop %v1015
    %v1019 = vmul.f32 1.0, %v1018
    %v1020 = vrcp.pop %v1016
    %v1021 = vmul.f32 1.0, %v1020
    %v1022 = vrcp.pop %v1017
    %v1023 = vmul.f32 1.0, %v1022
    %v1024 = vtanh.pop %v1005
    %v1026 = vrot.slane %v913, 6
    %v1028 = vmul.f32 %v1021, %v1026
    %v1029 = vmul.f32 %v1019, %v1024
    %v1030 = vadd.f32 %v1028, %v1029
    %v1031 = vtanh.pop %v1030
    %v1032 = vmul.f32 %v1023, %v1031
    %v1033 = vpack.c.bf16 %v1032, %v1032
    %1034 = vmatprep.subr.bf16.mxu0 %v359
    %1035 = vmatpush1.bf16.msra.mxu0 %v358
    %1036 = vmatprep.subr.bf16.mxu0 %v363
    %1037 = vmatpush1.bf16.msra.mxu0 %v362
    %1038 = vmatprep.subr.bf16.mxu0 %v367
    %1039 = vmatpush1.bf16.msra.mxu0 %v366
    %1040 = vmatprep.subr.bf16.mxu0 %v371
    %1041 = vmatpush1.bf16.msra.mxu0 %v370
    %1042 = vmatprep.subr.bf16.mxu0 %v375
    %1043 = vmatpush1.bf16.msra.mxu0 %v374
    %1044 = vmatprep.subr.bf16.mxu0 %v379
    %1045 = vmatpush1.bf16.msra.mxu0 %v378
    %1046 = vmatprep.subr.bf16.mxu0 %v383
    %1047 = vmatpush1.bf16.msra.mxu0 %v382
    %1048 = vmatprep.subr.bf16.mxu0 %v387
    %1049 = vmatpush1.bf16.msra.mxu0 %v386
    %1050 = vmatprep.subr.bf16.mxu0 0
    %1051 = vmatpush1.bf16.msra.mxu0 0
    %1052 = vmatprep.subr.bf16.mxu0 0
    %1053 = vmatpush1.bf16.msra.mxu0 0
    %1054 = vmatprep.subr.bf16.mxu0 0
    %1055 = vmatpush1.bf16.msra.mxu0 0
    %1056 = vmatprep.subr.bf16.mxu0 0
    %1057 = vmatpush1.bf16.msra.mxu0 0
    %1058 = vmatprep.subr.bf16.mxu0 0
    %1059 = vmatpush1.bf16.msra.mxu0 0
    %1060 = vmatprep.subr.bf16.mxu0 0
    %1061 = vmatpush1.bf16.msra.mxu0 0
    %1062 = vmatprep.subr.bf16.mxu0 0
    %1063 = vmatpush1.bf16.msra.mxu0 0
    %1064 = vmatprep.subr.bf16.mxu0 0
    %1065 = vmatpush1.bf16.msra.mxu0 0
    %1066 = vmatprep.mubr.bf16.mxu0 0
    %1067 = vmatmul.mubr.bf16.gmra.mrb[0].mxu0 %v1033
    %v1068 = vpop.f32.mrb[0].mxu0
    %v1069 = vadd.f32 0.0, %v1068
    %v1070 = vpop.f32.mrb[0].mxu0
    %v1071 = vadd.f32 0.0, %v1070
    %v1072 = vpop.f32.mrb[0].mxu0
    %v1073 = vpop.f32.mrb[0].mxu0
    %1074 = vdwg.mxu0
    %1075 = vmatprep.subr.bf16.mxu0 %v361
    %1076 = vmatpush1.bf16.msra.mxu0 %v360
    %1077 = vmatprep.subr.bf16.mxu0 %v365
    %1078 = vmatpush1.bf16.msra.mxu0 %v364
    %1079 = vmatprep.subr.bf16.mxu0 %v369
    %1080 = vmatpush1.bf16.msra.mxu0 %v368
    %1081 = vmatprep.subr.bf16.mxu0 %v373
    %1082 = vmatpush1.bf16.msra.mxu0 %v372
    %1083 = vmatprep.subr.bf16.mxu0 %v377
    %1084 = vmatpush1.bf16.msra.mxu0 %v376
    %1085 = vmatprep.subr.bf16.mxu0 %v381
    %1086 = vmatpush1.bf16.msra.mxu0 %v380
    %1087 = vmatprep.subr.bf16.mxu0 %v385
    %1088 = vmatpush1.bf16.msra.mxu0 %v384
    %1089 = vmatprep.subr.bf16.mxu0 %v389
    %1090 = vmatpush1.bf16.msra.mxu0 %v388
    %1091 = vmatprep.subr.bf16.mxu0 0
    %1092 = vmatpush1.bf16.msra.mxu0 0
    %1093 = vmatprep.subr.bf16.mxu0 0
    %1094 = vmatpush1.bf16.msra.mxu0 0
    %1095 = vmatprep.subr.bf16.mxu0 0
    %1096 = vmatpush1.bf16.msra.mxu0 0
    %1097 = vmatprep.subr.bf16.mxu0 0
    %1098 = vmatpush1.bf16.msra.mxu0 0
    %1099 = vmatprep.subr.bf16.mxu0 0
    %1100 = vmatpush1.bf16.msra.mxu0 0
    %1101 = vmatprep.subr.bf16.mxu0 0
    %1102 = vmatpush1.bf16.msra.mxu0 0
    %1103 = vmatprep.subr.bf16.mxu0 0
    %1104 = vmatpush1.bf16.msra.mxu0 0
    %1105 = vmatprep.subr.bf16.mxu0 0
    %1106 = vmatpush1.bf16.msra.mxu0 0
    %1107 = vmatprep.mubr.bf16.mxu0 0
    %1108 = vmatmul.mubr.bf16.gmra.mrb[0].mxu0 %v1033
    %v1109 = vpop.f32.mrb[0].mxu0
    %v1110 = vadd.f32 0.0, %v1109
    %v1111 = vpop.f32.mrb[0].mxu0
    %v1112 = vadd.f32 0.0, %v1111
    %v1113 = vpop.f32.mrb[0].mxu0
    %v1114 = vpop.f32.mrb[0].mxu0
    %1115 = vdwg.mxu0
    %v1120 = vrot.slane %v1069, 6
    %v1121 = vrot.slane %v1071, 6
    %v1122 = vrot.slane %v1110, 6
    %v1123 = vrot.slane %v1112, 6
    %v1128 = vadd.f32 %v183, %v1120
    %v1129 = vadd.f32 %v185, %v1121
    %v1130 = vadd.f32 %v226, %v1122
    %v1131 = vadd.f32 %v228, %v1123
    %v1132 = vxor.u32 %v1128, 2147483648
    %v1133 = vxor.u32 %v1129, 2147483648
    %v1134 = vxor.u32 %v1130, 2147483648
    %v1135 = vmul.f32 %v1132, 1.442695
    %v1136 = vpow.pop %v1135
    %v1137 = vmul.f32 %v1133, 1.442695
    %v1138 = vpow.pop %v1137
    %v1139 = vmul.f32 %v1134, 1.442695
    %v1140 = vpow.pop %v1139
    %v1141 = vadd.f32 %v1136, 1.0
    %v1142 = vadd.f32 %v1138, 1.0
    %v1143 = vadd.f32 %v1140, 1.0
    %v1144 = vrcp.pop %v1141
    %v1145 = vmul.f32 1.0, %v1144
    %v1146 = vrcp.pop %v1142
    %v1147 = vmul.f32 1.0, %v1146
    %v1148 = vrcp.pop %v1143
    %v1149 = vmul.f32 1.0, %v1148
    %v1150 = vtanh.pop %v1131
    %v1152 = vrot.slane %v1030, 6
    %v1154 = vmul.f32 %v1147, %v1152
    %v1155 = vmul.f32 %v1145, %v1150
    %v1156 = vadd.f32 %v1154, %v1155
    %v1157 = vtanh.pop %v1156
    %v1158 = vmul.f32 %v1149, %v1157
    %v1159 = vpack.c.bf16 %v1158, %v1158
    %v1161 = vrot.slane %v1159, 1
    %1163 = vmatprep.subr.bf16.mxu0 %v359
    %1164 = vmatpush1.bf16.msra.mxu0 %v358
    %1165 = vmatprep.subr.bf16.mxu0 %v363
    %1166 = vmatpush1.bf16.msra.mxu0 %v362
    %1167 = vmatprep.subr.bf16.mxu0 %v367
    %1168 = vmatpush1.bf16.msra.mxu0 %v366
    %1169 = vmatprep.subr.bf16.mxu0 %v371
    %1170 = vmatpush1.bf16.msra.mxu0 %v370
    %1171 = vmatprep.subr.bf16.mxu0 %v375
    %1172 = vmatpush1.bf16.msra.mxu0 %v374
    %1173 = vmatprep.subr.bf16.mxu0 %v379
    %1174 = vmatpush1.bf16.msra.mxu0 %v378
    %1175 = vmatprep.subr.bf16.mxu0 %v383
    %1176 = vmatpush1.bf16.msra.mxu0 %v382
    %1177 = vmatprep.subr.bf16.mxu0 %v387
    %1178 = vmatpush1.bf16.msra.mxu0 %v386
    %1179 = vmatprep.subr.bf16.mxu0 0
    %1180 = vmatpush1.bf16.msra.mxu0 0
    %1181 = vmatprep.subr.bf16.mxu0 0
    %1182 = vmatpush1.bf16.msra.mxu0 0
    %1183 = vmatprep.subr.bf16.mxu0 0
    %1184 = vmatpush1.bf16.msra.mxu0 0
    %1185 = vmatprep.subr.bf16.mxu0 0
    %1186 = vmatpush1.bf16.msra.mxu0 0
    %1187 = vmatprep.subr.bf16.mxu0 0
    %1188 = vmatpush1.bf16.msra.mxu0 0
    %1189 = vmatprep.subr.bf16.mxu0 0
    %1190 = vmatpush1.bf16.msra.mxu0 0
    %1191 = vmatprep.subr.bf16.mxu0 0
    %1192 = vmatpush1.bf16.msra.mxu0 0
    %1193 = vmatprep.subr.bf16.mxu0 0
    %1194 = vmatpush1.bf16.msra.mxu0 0
    %1195 = vmatprep.mubr.bf16.mxu0 0
    %1196 = vmatmul.mubr.bf16.gmra.mrb[0].mxu0 %v1161
    %v1197 = vpop.f32.mrb[0].mxu0
    %v1198 = vadd.f32 0.0, %v1197
    %v1199 = vpop.f32.mrb[0].mxu0
    %v1200 = vadd.f32 0.0, %v1199
    %v1201 = vpop.f32.mrb[0].mxu0
    %v1202 = vpop.f32.mrb[0].mxu0
    %1203 = vdwg.mxu0
    %1204 = vmatprep.subr.bf16.mxu0 %v361
    %1205 = vmatpush1.bf16.msra.mxu0 %v360
    %1206 = vmatprep.subr.bf16.mxu0 %v365
    %1207 = vmatpush1.bf16.msra.mxu0 %v364
    %1208 = vmatprep.subr.bf16.mxu0 %v369
    %1209 = vmatpush1.bf16.msra.mxu0 %v368
    %1210 = vmatprep.subr.bf16.mxu0 %v373
    %1211 = vmatpush1.bf16.msra.mxu0 %v372
    %1212 = vmatprep.subr.bf16.mxu0 %v377
    %1213 = vmatpush1.bf16.msra.mxu0 %v376
    %1214 = vmatprep.subr.bf16.mxu0 %v381
    %1215 = vmatpush1.bf16.msra.mxu0 %v380
    %1216 = vmatprep.subr.bf16.mxu0 %v385
    %1217 = vmatpush1.bf16.msra.mxu0 %v384
    %1218 = vmatprep.subr.bf16.mxu0 %v389
    %1219 = vmatpush1.bf16.msra.mxu0 %v388
    %1220 = vmatprep.subr.bf16.mxu0 0
    %1221 = vmatpush1.bf16.msra.mxu0 0
    %1222 = vmatprep.subr.bf16.mxu0 0
    %1223 = vmatpush1.bf16.msra.mxu0 0
    %1224 = vmatprep.subr.bf16.mxu0 0
    %1225 = vmatpush1.bf16.msra.mxu0 0
    %1226 = vmatprep.subr.bf16.mxu0 0
    %1227 = vmatpush1.bf16.msra.mxu0 0
    %1228 = vmatprep.subr.bf16.mxu0 0
    %1229 = vmatpush1.bf16.msra.mxu0 0
    %1230 = vmatprep.subr.bf16.mxu0 0
    %1231 = vmatpush1.bf16.msra.mxu0 0
    %1232 = vmatprep.subr.bf16.mxu0 0
    %1233 = vmatpush1.bf16.msra.mxu0 0
    %1234 = vmatprep.subr.bf16.mxu0 0
    %1235 = vmatpush1.bf16.msra.mxu0 0
    %1236 = vmatprep.mubr.bf16.mxu0 0
    %1237 = vmatmul.mubr.bf16.gmra.mrb[0].mxu0 %v1161
    %v1238 = vpop.f32.mrb[0].mxu0
    %v1239 = vadd.f32 0.0, %v1238
    %v1240 = vpop.f32.mrb[0].mxu0
    %v1241 = vadd.f32 0.0, %v1240
    %v1242 = vpop.f32.mrb[0].mxu0
    %v1243 = vpop.f32.mrb[0].mxu0
    %1244 = vdwg.mxu0
    %v1249 = vrot.slane %v1198, 4
    %v1250 = vrot.slane %v1200, 4
    %v1251 = vrot.slane %v1239, 4
    %v1252 = vrot.slane %v1241, 4
    %v1257 = vadd.f32 %v183, %v1249
    %v1258 = vadd.f32 %v185, %v1250
    %v1259 = vadd.f32 %v226, %v1251
    %v1260 = vadd.f32 %v228, %v1252
    %v1261 = vxor.u32 %v1257, 2147483648
    %v1262 = vxor.u32 %v1258, 2147483648
    %v1263 = vxor.u32 %v1259, 2147483648
    %v1264 = vmul.f32 %v1261, 1.442695
    %v1265 = vpow.pop %v1264
    %v1266 = vmul.f32 %v1262, 1.442695
    %v1267 = vpow.pop %v1266
    %v1268 = vmul.f32 %v1263, 1.442695
    %v1269 = vpow.pop %v1268
    %v1270 = vadd.f32 %v1265, 1.0
    %v1271 = vadd.f32 %v1267, 1.0
    %v1272 = vadd.f32 %v1269, 1.0
    %v1273 = vrcp.pop %v1270
    %v1274 = vmul.f32 1.0, %v1273
    %v1275 = vrcp.pop %v1271
    %v1276 = vmul.f32 1.0, %v1275
    %v1277 = vrcp.pop %v1272
    %v1278 = vmul.f32 1.0, %v1277
    %v1279 = vtanh.pop %v1260
    %v1281 = vrot.slane %v1156, 6
    %v1283 = vmul.f32 %v1276, %v1281
    %v1284 = vmul.f32 %v1274, %v1279
    %v1285 = vadd.f32 %v1283, %v1284
    %v1286 = vtanh.pop %v1285
    %v1287 = vmul.f32 %v1278, %v1286
    %v1288 = vpack.c.bf16 %v1287, %v1287
    %v1290 = vrot.slane %v1288, 2
    %1292 = vmatprep.subr.bf16.mxu0 %v359
    %1293 = vmatpush1.bf16.msra.mxu0 %v358
    %1294 = vmatprep.subr.bf16.mxu0 %v363
    %1295 = vmatpush1.bf16.msra.mxu0 %v362
    %1296 = vmatprep.subr.bf16.mxu0 %v367
    %1297 = vmatpush1.bf16.msra.mxu0 %v366
    %1298 = vmatprep.subr.bf16.mxu0 %v371
    %1299 = vmatpush1.bf16.msra.mxu0 %v370
    %1300 = vmatprep.subr.bf16.mxu0 %v375
    %1301 = vmatpush1.bf16.msra.mxu0 %v374
    %1302 = vmatprep.subr.bf16.mxu0 %v379
    %1303 = vmatpush1.bf16.msra.mxu0 %v378
    %1304 = vmatprep.subr.bf16.mxu0 %v383
    %1305 = vmatpush1.bf16.msra.mxu0 %v382
    %1306 = vmatprep.subr.bf16.mxu0 %v387
    %1307 = vmatpush1.bf16.msra.mxu0 %v386
    %1308 = vmatprep.subr.bf16.mxu0 0
    %1309 = vmatpush1.bf16.msra.mxu0 0
    %1310 = vmatprep.subr.bf16.mxu0 0
    %1311 = vmatpush1.bf16.msra.mxu0 0
    %1312 = vmatprep.subr.bf16.mxu0 0
    %1313 = vmatpush1.bf16.msra.mxu0 0
    %1314 = vmatprep.subr.bf16.mxu0 0
    %1315 = vmatpush1.bf16.msra.mxu0 0
    %1316 = vmatprep.subr.bf16.mxu0 0
    %1317 = vmatpush1.bf16.msra.mxu0 0
    %1318 = vmatprep.subr.bf16.mxu0 0
    %1319 = vmatpush1.bf16.msra.mxu0 0
    %1320 = vmatprep.subr.bf16.mxu0 0
    %1321 = vmatpush1.bf16.msra.mxu0 0
    %1322 = vmatprep.subr.bf16.mxu0 0
    %1323 = vmatpush1.bf16.msra.mxu0 0
    %1324 = vmatprep.mubr.bf16.mxu0 0
    %1325 = vmatmul.mubr.bf16.gmra.mrb[0].mxu0 %v1290
    %v1326 = vpop.f32.mrb[0].mxu0
    %v1327 = vadd.f32 0.0, %v1326
    %v1328 = vpop.f32.mrb[0].mxu0
    %v1329 = vadd.f32 0.0, %v1328
    %v1330 = vpop.f32.mrb[0].mxu0
    %v1331 = vpop.f32.mrb[0].mxu0
    %1332 = vdwg.mxu0
    %1333 = vmatprep.subr.bf16.mxu0 %v361
    %1334 = vmatpush1.bf16.msra.mxu0 %v360
    %1335 = vmatprep.subr.bf16.mxu0 %v365
    %1336 = vmatpush1.bf16.msra.mxu0 %v364
    %1337 = vmatprep.subr.bf16.mxu0 %v369
    %1338 = vmatpush1.bf16.msra.mxu0 %v368
    %1339 = vmatprep.subr.bf16.mxu0 %v373
    %1340 = vmatpush1.bf16.msra.mxu0 %v372
    %1341 = vmatprep.subr.bf16.mxu0 %v377
    %1342 = vmatpush1.bf16.msra.mxu0 %v376
    %1343 = vmatprep.subr.bf16.mxu0 %v381
    %1344 = vmatpush1.bf16.msra.mxu0 %v380
    %1345 = vmatprep.subr.bf16.mxu0 %v385
    %1346 = vmatpush1.bf16.msra.mxu0 %v384
    %1347 = vmatprep.subr.bf16.mxu0 %v389
    %1348 = vmatpush1.bf16.msra.mxu0 %v388
    %1349 = vmatprep.subr.bf16.mxu0 0
    %1350 = vmatpush1.bf16.msra.mxu0 0
    %1351 = vmatprep.subr.bf16.mxu0 0
    %1352 = vmatpush1.bf16.msra.mxu0 0
    %1353 = vmatprep.subr.bf16.mxu0 0
    %1354 = vmatpush1.bf16.msra.mxu0 0
    %1355 = vmatprep.subr.bf16.mxu0 0
    %1356 = vmatpush1.bf16.msra.mxu0 0
    %1357 = vmatprep.subr.bf16.mxu0 0
    %1358 = vmatpush1.bf16.msra.mxu0 0
    %1359 = vmatprep.subr.bf16.mxu0 0
    %1360 = vmatpush1.bf16.msra.mxu0 0
    %1361 = vmatprep.subr.bf16.mxu0 0
    %1362 = vmatpush1.bf16.msra.mxu0 0
    %1363 = vmatprep.subr.bf16.mxu0 0
    %1364 = vmatpush1.bf16.msra.mxu0 0
    %1365 = vmatprep.mubr.bf16.mxu0 0
    %1366 = vmatmul.mubr.bf16.gmra.mrb[0].mxu0 %v1290
    %v1367 = vpop.f32.mrb[0].mxu0
    %v1368 = vadd.f32 0.0, %v1367
    %v1369 = vpop.f32.mrb[0].mxu0
    %v1370 = vadd.f32 0.0, %v1369
    %v1371 = vpop.f32.mrb[0].mxu0
    %v1372 = vpop.f32.mrb[0].mxu0
    %1373 = vdwg.mxu0
    %v1378 = vrot.slane %v1327, 2
    %v1379 = vrot.slane %v1329, 2
    %v1380 = vrot.slane %v1368, 2
    %v1381 = vrot.slane %v1370, 2
    %v1386 = vadd.f32 %v183, %v1378
    %v1387 = vadd.f32 %v185, %v1379
    %v1388 = vadd.f32 %v226, %v1380
    %v1389 = vadd.f32 %v228, %v1381
    %v1390 = vxor.u32 %v1386, 2147483648
    %v1391 = vxor.u32 %v1387, 2147483648
    %v1392 = vxor.u32 %v1388, 2147483648
    %v1393 = vmul.f32 %v1390, 1.442695
    %v1394 = vpow.pop %v1393
    %v1395 = vmul.f32 %v1391, 1.442695
    %v1396 = vpow.pop %v1395
    %v1397 = vmul.f32 %v1392, 1.442695
    %v1398 = vpow.pop %v1397
    %v1399 = vadd.f32 %v1394, 1.0
    %v1400 = vadd.f32 %v1396, 1.0
    %v1401 = vadd.f32 %v1398, 1.0
    %v1402 = vrcp.pop %v1399
    %v1403 = vmul.f32 1.0, %v1402
    %v1404 = vrcp.pop %v1400
    %v1405 = vmul.f32 1.0, %v1404
    %v1406 = vrcp.pop %v1401
    %v1407 = vmul.f32 1.0, %v1406
    %v1408 = vtanh.pop %v1389
    %v1410 = vrot.slane %v1285, 6
    %v1412 = vmul.f32 %v1405, %v1410
    %v1413 = vmul.f32 %v1403, %v1408
    %v1414 = vadd.f32 %v1412, %v1413
    %v1415 = vtanh.pop %v1414
    %v1416 = vmul.f32 %v1407, %v1415
    %v1417 = vpack.c.bf16 %v1416, %v1416
    %v1418 = vld [vmem:[#allocation8] sm:$0xf]
    %v1419 = vld [vmem:[#allocation8 + $0x4] sm:$0xf]
    %v1420 = vld [vmem:[#allocation8 + $0x8] sm:$0xf]
    %v1421 = vld [vmem:[#allocation8 + $0xc] sm:$0xf]
    %v1422 = vld [vmem:[#allocation8 + $0x10] sm:$0xf]
    %v1423 = vld [vmem:[#allocation8 + $0x14] sm:$0xf]
    %v1424 = vld [vmem:[#allocation8 + $0x18] sm:$0xf]
    %v1425 = vld [vmem:[#allocation8 + $0x1c] sm:$0xf]
    %v1426 = vld [vmem:[#allocation8 + $0x20] sm:$0xf]
    %v1427 = vld [vmem:[#allocation8 + $0x24] sm:$0xf]
    %v1428 = vld [vmem:[#allocation8 + $0x28] sm:$0xf]
    %v1429 = vld [vmem:[#allocation8 + $0x2c] sm:$0xf]
    %v1430 = vld [vmem:[#allocation8 + $0x30] sm:$0xf]
    %v1431 = vld [vmem:[#allocation8 + $0x34] sm:$0xf]
    %v1432 = vld [vmem:[#allocation8 + $0x38] sm:$0xf]
    %v1433 = vld [vmem:[#allocation8 + $0x3c] sm:$0xf]
    %v1434 = vld [vmem:[%s5] sm:$0x1]
    %v1436 = vlaneseq
    %v1437 = vshrl.u32 %v1436, 7
    %v1438 = vsub.s32 0, %v1437
    %v1439 = vrot.slane %v1434, %v1438
    %v1442 = vrot.slane %v1417, 3
    %v1460 = vunpack.c.l.b16 %v1418
    %v1461 = vunpack.c.l.b16 %v1419
    %v1462 = vunpack.c.l.b16 %v1420
    %v1463 = vunpack.c.l.b16 %v1421
    %v1464 = vunpack.c.l.b16 %v1422
    %v1465 = vunpack.c.l.b16 %v1423
    %v1466 = vunpack.c.l.b16 %v1424
    %v1467 = vunpack.c.l.b16 %v1425
    %v1468 = vunpack.c.l.b16 %v1426
    %v1469 = vunpack.c.l.b16 %v1427
    %v1470 = vunpack.c.l.b16 %v1428
    %v1471 = vunpack.c.l.b16 %v1429
    %v1472 = vunpack.c.l.b16 %v1430
    %v1473 = vunpack.c.l.b16 %v1431
    %v1474 = vunpack.c.l.b16 %v1432
    %v1475 = vunpack.c.l.b16 %v1433
    %v1476 = vpack.c.b16 %v1461, %v1460
    %v1477 = vpack.c.b16 %v1463, %v1462
    %v1478 = vpack.c.b16 %v1465, %v1464
    %v1479 = vpack.c.b16 %v1467, %v1466
    %v1480 = vpack.c.b16 %v1469, %v1468
    %v1481 = vpack.c.b16 %v1471, %v1470
    %v1482 = vpack.c.b16 %v1473, %v1472
    %v1483 = vpack.c.b16 %v1475, %v1474
    %1492 = vmatprep.subr.bf16.mxu0 0
    %1493 = vmatpush1.bf16.msra.mxu0 %v1476
    %1494 = vmatprep.subr.bf16.mxu0 0
    %1495 = vmatpush1.bf16.msra.mxu0 %v1477
    %1496 = vmatprep.subr.bf16.mxu0 0
    %1497 = vmatpush1.bf16.msra.mxu0 %v1478
    %1498 = vmatprep.subr.bf16.mxu0 0
    %1499 = vmatpush1.bf16.msra.mxu0 %v1479
    %1500 = vmatprep.subr.bf16.mxu0 0
    %1501 = vmatpush1.bf16.msra.mxu0 %v1480
    %1502 = vmatprep.subr.bf16.mxu0 0
    %1503 = vmatpush1.bf16.msra.mxu0 %v1481
    %1504 = vmatprep.subr.bf16.mxu0 0
    %1505 = vmatpush1.bf16.msra.mxu0 %v1482
    %1506 = vmatprep.subr.bf16.mxu0 0
    %1507 = vmatpush1.bf16.msra.mxu0 %v1483
    %1508 = vmatprep.subr.bf16.mxu0 0
    %1509 = vmatpush1.bf16.msra.mxu0 0
    %1510 = vmatprep.subr.bf16.mxu0 0
    %1511 = vmatpush1.bf16.msra.mxu0 0
    %1512 = vmatprep.subr.bf16.mxu0 0
    %1513 = vmatpush1.bf16.msra.mxu0 0
    %1514 = vmatprep.subr.bf16.mxu0 0
    %1515 = vmatpush1.bf16.msra.mxu0 0
    %1516 = vmatprep.subr.bf16.mxu0 0
    %1517 = vmatpush1.bf16.msra.mxu0 0
    %1518 = vmatprep.subr.bf16.mxu0 0
    %1519 = vmatpush1.bf16.msra.mxu0 0
    %1520 = vmatprep.subr.bf16.mxu0 0
    %1521 = vmatpush1.bf16.msra.mxu0 0
    %1522 = vmatprep.subr.bf16.mxu0 0
    %1523 = vmatpush1.bf16.msra.mxu0 0
    %1524 = vmatprep.mubr.bf16.mxu0 0
    %1525 = vmatmul.mubr.bf16.gmra.mrb[0].mxu0 %v1442
    %v1526 = vpop.f32.mrb[0].mxu0
    %v1527 = vadd.f32 %v1439, %v1526
    %v1528 = vpop.f32.mrb[0].mxu0
    %v1529 = vpop.f32.mrb[0].mxu0
    %v1530 = vpop.f32.mrb[0].mxu0
    %1531 = vdwg.mxu0
    %v1532 = vmax.f32 %v1527, 0.0
    %v1533 = vld [vmem:[%s6] sm:$0x1]
    %v1535 = vlaneseq
    %v1536 = vshrl.u32 %v1535, 7
    %v1537 = vsub.s32 0, %v1536
    %v1538 = vrot.slane %v1533, %v1537
    %v1540 = vmul.f32 %v1532, %v1538
    %vm1541 = vcmask 1041408
    %v1542 = vsel %vm1541, %v1540, 0.0
    %1543 = vadd.xlane.f32.xlu0 %v1542
    %v1544 = vpop.xlane.xlu0 %1543
    %v1545 = vld [vmem:[#allocation2] sm:$0x1]
    %v1547 = vlaneseq
    %v1548 = vshrl.u32 %v1547, 7
    %v1549 = vsub.s32 0, %v1548
    %v1550 = vrot.slane %v1545, %v1549
    %v1552 = vadd.f32 %v1544, %v1550
    %vm1553 = vcmask 1024
    %1554 = vst.msk [vmem:[%s8] sm:$0x3] %vm1553, %v1552
    // Predicated region
    $region50: #{tpu_custom_call.1} parent=1 // pred_check
      _
    $region51: #{tpu_custom_call.1} parent=1 // pred_check_branch
      %1556 = sbr.rel (0) target = $region53
    $region52: #{tpu_custom_call.1} parent=1 // pred_region
      _
    $region53: #{tpu_custom_call.1} parent=1 // pred_fallthru
      _
    // Predicated region
    $region54: #{tpu_custom_call.1} parent=1 // pred_check
      _
    $region55: #{tpu_custom_call.1} parent=1 // pred_check_branch
      %1558 = sbr.rel (0) target = $region57
    $region56: #{tpu_custom_call.1} parent=1 // pred_region
      _
    $region57: #{tpu_custom_call.1} parent=1 // pred_fallthru
      _
    %1559 = vsyncpa [#allocation4], 1
    %1560 = vsyncpa [#allocation6], 1
    %1561 = vsyncpa [#allocation9], 1

</llo_original>
